<compile_context>
chip_gen: v7x
topology: tpu7x:2x2x1
jax: 0.10.0
libtpu: 0.0.40
codegen_flags: <defaults>
</compile_context>

<pallas_src>
import numpy as np
import jax
import jax.numpy as jnp
from jax import lax
from jax.experimental import pallas as pl
from jax.experimental.pallas import tpu as pltpu


def _round_up(x, m):
    return ((x + m - 1) // m) * m


def _vmem_capacity_bytes():
    """Best-effort VMEM capacity query; conservative 64 MiB (v7x) fallback."""
    try:
        info = pltpu.get_tpu_info()
        cap = getattr(info, "vmem_capacity_bytes", None)
        if cap:
            return int(cap)
    except Exception:
        pass
    return 64 << 20


def _pick_d_tile(D, H, W, k_pad, cout, in_item, out_item, budget_bytes):
    """Largest D-tile dividing D whose total per-step VMEM footprint fits."""
    hwp = (H + 2) * (W + 2)
    tail = _round_up(2 * (W + 2) + 2, 128)
    for dt in sorted((d for d in range(1, D + 1) if D % d == 0), reverse=True):
        lw = _round_up(dt * hwp, 128)
        tws = lw + tail
        nd = D // dt
        footprint = (
            2 * k_pad * tws * in_item          # double-buffered patch tile
            + 2 * cout * nd * lw * out_item    # resident output block (pipelined over N)
            + cout * lw * 4                    # f32 accumulator working set
            + 9 * cout * k_pad * in_item       # weights (resident)
            + lw * 4                           # validity mask
            + (1 << 20))                       # slack for Mosaic internals
        if footprint <= budget_bytes:
            return dt
    raise ValueError(
        "ConvInsBlock volume too large for the single-pass resident-output "
        "kernel at this VMEM budget. "
        "TODO(synk): two-pass conv+stats / normalize split for huge volumes.")


def _make_kernel(nd, lw, taps_off, alpha, eps, inv_n):
    n_taps = len(taps_off)

    def kernel(p_ref, w_ref, m_ref, o_ref, sum_ref, sq_ref):
        # p_ref : (1, K_pad, TWS)    kd-only patch slab for this (batch, D-tile)
        # w_ref : (9, Cout, K_pad)   per-(kh,kw) conv weight slabs (resident)
        # m_ref : (1, LW)            validity mask (1 = real voxel, 0 = padding)
        # o_ref : (1, Cout, nd*LW)   output block, resident across the D-tile axis
        # sum_ref, sq_ref : (Cout,1) running per-channel sum / sum-of-squares (f32)
        t = pl.program_id(1)

        @pl.when(t == 0)
        def _init():
            sum_ref[...] = jnp.zeros_like(sum_ref)
            sq_ref[...] = jnp.zeros_like(sq_ref)

        # Conv3d for this D-tile: 9 (kh,kw) taps as shifted lane windows of the
        # patch slab, each a (Cout,K)x(K,LW) MXU matmul accumulated in f32.
        off0 = taps_off[0]
        acc = jnp.dot(w_ref[0], p_ref[0, :, off0:off0 + lw],
                      preferred_element_type=jnp.float32)
        for j in range(1, n_taps):
            off = taps_off[j]
            acc = acc + jnp.dot(w_ref[j], p_ref[0, :, off:off + lw],
                                preferred_element_type=jnp.float32)

        # Zero the padded (invalid) columns so the stats only see real voxels.
        acc = acc * m_ref[...]

        # One-pass InstanceNorm statistics, accumulated across D-tiles.
        # TODO(synk): switch to a shifted/Welford accumulation if f32
        # cancellation in E[x^2]-mean^2 ever bites for very large DHW.
        sum_ref[...] += jnp.sum(acc, axis=1, keepdims=True)
        sq_ref[...] += jnp.sum(acc * acc, axis=1, keepdims=True)

        start = pl.multiple_of(t * lw, 128)
        o_ref[0, :, pl.ds(start, lw)] = acc.astype(o_ref.dtype)

        @pl.when(t == nd - 1)
        def _finalize():
            # InstanceNorm3d (affine=False, biased variance, eps) + LeakyReLU.
            mean = sum_ref[...] * inv_n                          # (Cout, 1)
            var = jnp.maximum(sq_ref[...] * inv_n - mean * mean, 0.0)
            scale = lax.rsqrt(var + eps)                         # EUP, stats only

            def normalize_tile(s):
                y = o_ref[0, :, pl.ds(s, lw)].astype(jnp.float32)
                y = (y - mean) * scale
                y = jnp.where(y > 0, y, alpha * y)
                o_ref[0, :, pl.ds(s, lw)] = y.astype(o_ref.dtype)

            if nd <= 8:                      # short: full unroll (LLO visibility)
                for i in range(nd):
                    normalize_tile(i * lw)
            else:                            # long: compact epilogue
                def body(i, carry):
                    normalize_tile(pl.multiple_of(i * lw, 128))
                    return carry
                lax.fori_loop(0, nd, body, 0)

    return kernel


def conv_ins_block(x_ncdhw, weight, bias=None, alpha=0.1, eps=1e-5,
                   compute_dtype=jnp.bfloat16, out_dtype=None, d_tile=None):
    """x: (N, Cin, D, H, W); weight: (Cout, Cin, 3, 3, 3).

    `bias` is accepted for API parity but ignored: InstanceNorm3d(affine=False)
    immediately follows the conv and subtracts the per-channel mean, so a
    per-channel bias cancels exactly.  NOTE: only valid while the norm stays
    affine=False and directly after the conv.
    """
    del bias
    N, Cin, D, H, W = x_ncdhw.shape
    Cout = weight.shape[0]
    assert weight.shape == (Cout, Cin, 3, 3, 3)
    out_dtype = x_ncdhw.dtype if out_dtype is None else out_dtype
    in_item = np.dtype(compute_dtype).itemsize
    out_item = np.dtype(out_dtype).itemsize

    DHW = D * H * W
    hwp = (H + 2) * (W + 2)
    K3 = 3 * Cin
    pack = 16 if in_item == 2 else 8          # sublane pack, NOT 128
    K_pad = _round_up(K3, pack)
    tail = _round_up(2 * (W + 2) + 2, 128)    # in-bounds room for the (kh,kw) shifts

    capacity = _vmem_capacity_bytes()
    if d_tile is None:
        d_tile = _pick_d_tile(D, H, W, K_pad, Cout, in_item, out_item,
                              int(0.70 * capacity))
    assert D % d_tile == 0, "d_tile must divide D"
    nd = D // d_tile
    lw = _round_up(d_tile * hwp, 128)         # lane-dense output tile width
    tws = lw + tail                           # stored patch-tile width

    # ---- XLA-side glue: kd-only patch tensor (~3x the input, vs 27x im2col) ----
    xp = jnp.pad(x_ncdhw, ((0, 0), (0, 0), (1, 1), (1, 1), (1, 1)))
    taps = [lax.slice_in_dim(xp, kd, kd + D, axis=2) for kd in range(3)]
    p3 = jnp.stack(taps, axis=2)                       # (N, Cin, 3, D, H+2, W+2)
    p3 = p3.reshape(N, K3, D, hwp)                     # K index = cin*3 + kd
    p3 = jnp.pad(p3, ((0, 0), (0, K_pad - K3), (0, 0), (0, 0)))
    p3 = p3.reshape(N, K_pad, nd, d_tile * hwp)
    p3 = jnp.pad(p3, ((0, 0), (0, 0), (0, 0), (0, tws - d_tile * hwp)))
    p3 = p3.reshape(N, K_pad, nd * tws).astype(compute_dtype)

    # Weights: one (Cout, K3) slab per (kh, kw), same cin*3+kd contraction order.
    w9 = jnp.transpose(weight, (3, 4, 0, 1, 2)).reshape(9, Cout, K3)
    w9 = jnp.pad(w9, ((0, 0), (0, 0), (0, K_pad - K3))).astype(compute_dtype)

    # Validity mask over one output tile (identical for every tile / batch elem).
    pos = np.arange(lw)
    hp = (pos % hwp) // (W + 2)
    wp = pos % (W + 2)
    mask = ((pos < d_tile * hwp) & (hp < H) & (wp < W)).astype(np.float32)
    mask = jnp.asarray(mask[None, :])                  # (1, lw)

    taps_off = tuple(kh * (W + 2) + kw for kh in range(3) for kw in range(3))
    kernel = _make_kernel(nd, lw, taps_off, float(alpha), float(eps), 1.0 / DHW)

    cost = pl.CostEstimate(
        flops=2 * N * Cout * 27 * Cin * DHW,
        transcendentals=N * Cout,
        bytes_accessed=int((p3.size + w9.size) * in_item
                           + N * Cout * nd * lw * out_item))

    out = pl.pallas_call(
        kernel,
        out_shape=jax.ShapeDtypeStruct((N, Cout, nd * lw), out_dtype),
        grid_spec=pltpu.PrefetchScalarGridSpec(
            num_scalar_prefetch=0,
            grid=(N, nd),
            in_specs=[
                pl.BlockSpec((1, K_pad, tws), lambda n, t: (n, 0, t)),
                pl.BlockSpec((9, Cout, K_pad), lambda n, t: (0, 0, 0)),
                pl.BlockSpec((1, lw), lambda n, t: (0, 0)),
            ],
            out_specs=pl.BlockSpec((1, Cout, nd * lw), lambda n, t: (n, 0, 0)),
            scratch_shapes=[
                pltpu.VMEM((Cout, 1), jnp.float32),   # per-channel sum
                pltpu.VMEM((Cout, 1), jnp.float32),   # per-channel sum of squares
            ]),
        compiler_params=pltpu.CompilerParams(
            # TODO(synk): for N==1 on v7x, also shard the D-tile axis across the
            # two TensorCores (per-core partial stats + tiny combine pass).
            dimension_semantics=("parallel", "arbitrary"),
            vmem_limit_bytes=int(0.9 * capacity)),
        cost_estimate=cost,
    )(p3, w9, mask)

    # Un-pad: drop the lane-rounding tail and the (H+2, W+2) halo columns.
    out = out.reshape(N, Cout, nd, lw)[..., :d_tile * hwp]
    out = out.reshape(N, Cout, D, H + 2, W + 2)[..., :H, :W]
    return out


def _reference(x_ncdhw, weight, bias, alpha=0.1, eps=1e-5):
    """Pure-JAX reference matching the PyTorch module semantics (with bias)."""
    y = lax.conv_general_dilated(
        x_ncdhw, weight, window_strides=(1, 1, 1), padding=[(1, 1)] * 3,
        dimension_numbers=("NCDHW", "OIDHW", "NCDHW"))
    y = y + bias[None, :, None, None, None]
    mean = jnp.mean(y, axis=(2, 3, 4), keepdims=True)
    var = jnp.mean((y - mean) ** 2, axis=(2, 3, 4), keepdims=True)
    y = (y - mean) * lax.rsqrt(var + eps)
    return jnp.where(y > 0, y, alpha * y)


if __name__ == "__main__":
    key = jax.random.PRNGKey(0)
    kx, kw, kb = jax.random.split(key, 3)

    N, Cin, Cout, D, H, W = 2, 4, 8, 8, 8, 8
    x = jax.random.normal(kx, (N, Cin, D, H, W), jnp.float32)
    weight = jax.random.normal(kw, (Cout, Cin, 3, 3, 3), jnp.float32) * 0.1
    bias = jax.random.normal(kb, (Cout,), jnp.float32) * 0.1

    ref = _reference(x, weight, bias)

    # Default path: bf16 matmul operands, auto D-tiling (single tile here).
    out = jax.block_until_ready(conv_ins_block(x, weight, bias))
    assert out.shape == ref.shape == (N, Cout, D, H, W)
    err_bf16 = float(jnp.max(jnp.abs(out - ref)))
    assert jnp.allclose(out, ref, atol=5e-2, rtol=5e-2), err_bf16

    # f32 path with forced D-tiling (exercises multi-tile stats accumulation,
    # the dynamic per-tile output stores, and the finalize loop).
    out32 = jax.block_until_ready(
        conv_ins_block(x, weight, bias, compute_dtype=jnp.float32, d_tile=2))
    err_f32 = float(jnp.max(jnp.abs(out32 - ref)))
    assert jnp.allclose(out32, ref, atol=1e-3, rtol=1e-3), err_f32

    print("KERNEL_OK")
</pallas_src>

<mosaic_0001>
module attributes {stable_mosaic.version = 11 : i64} {
  func.func @kernel(%arg0: i32, %arg1: i32, %arg2: memref<1x16x1024xbf16, #tpu.memory_space<vmem>>, %arg3: memref<9x8x16xbf16, #tpu.memory_space<vmem>>, %arg4: memref<1x896xf32, #tpu.memory_space<vmem>>, %arg5: memref<1x8x896xf32, #tpu.memory_space<vmem>>, %arg6: memref<8x1xf32, #tpu.memory_space<vmem>>, %arg7: memref<8x1xf32, #tpu.memory_space<vmem>>) attributes {dimension_semantics = [#tpu.dimension_semantics<parallel>, #tpu.dimension_semantics<arbitrary>], iteration_bounds = array<i64: 2, 1>, scalar_prefetch = 0 : i64, scratch_operands = 2 : i64, tpu.core_type = #tpu.core_type<tc>, window_params = [{transform_indices = @transform_0, window_bounds = array<i64: 1, 16, 1024>}, {pipeline_mode = #tpu.pipeline_mode<synchronous>, transform_indices = @transform_1, window_bounds = array<i64: 9, 8, 16>}, {pipeline_mode = #tpu.pipeline_mode<synchronous>, transform_indices = @transform_2, window_bounds = array<i64: 1, 896>}, {transform_indices = @transform_3, window_bounds = array<i64: 1, 8, 896>}]} {
    %c0_i32 = arith.constant 0 : i32
    %0 = arith.cmpi eq, %arg1, %c0_i32 : i32
    %1 = arith.extui %0 : i1 to i32
    %c0_i32_0 = arith.constant 0 : i32
    %2 = arith.cmpi ne, %1, %c0_i32_0 : i32
    scf.if %2 {
      %cst_64 = arith.constant 0.000000e+00 : f32
      %79 = vector.broadcast %cst_64 : f32 to vector<8x1xf32>
      %c0_65 = arith.constant 0 : index
      %c0_66 = arith.constant 0 : index
      %80 = vector.load %arg6[%c0_65, %c0_66] : memref<8x1xf32, #tpu.memory_space<vmem>>, vector<8x1xf32>
      tpu.vector_store %arg6[%c0_65, %c0_66], %79 {strides = array<i32>} : memref<8x1xf32, #tpu.memory_space<vmem>>, vector<8x1xf32>,
      %cst_67 = arith.constant 0.000000e+00 : f32
      %81 = vector.broadcast %cst_67 : f32 to vector<8x1xf32>
      %c0_68 = arith.constant 0 : index
      %c0_69 = arith.constant 0 : index
      %82 = vector.load %arg7[%c0_68, %c0_69] : memref<8x1xf32, #tpu.memory_space<vmem>>, vector<8x1xf32>
      tpu.vector_store %arg7[%c0_68, %c0_69], %81 {strides = array<i32>} : memref<8x1xf32, #tpu.memory_space<vmem>>, vector<8x1xf32>,
    } else {
    }
    %c0 = arith.constant 0 : index
    %c0_1 = arith.constant 0 : index
    %c0_2 = arith.constant 0 : index
    %3 = vector.load %arg3[%c0, %c0_1, %c0_2] : memref<9x8x16xbf16, #tpu.memory_space<vmem>>, vector<1x8x16xbf16>
    %4 = vector.shape_cast %3 : vector<1x8x16xbf16> to vector<8x16xbf16>
    %c0_3 = arith.constant 0 : index
    %c0_4 = arith.constant 0 : index
    %c0_5 = arith.constant 0 : index
    %5 = vector.load %arg2[%c0_3, %c0_4, %c0_5] : memref<1x16x1024xbf16, #tpu.memory_space<vmem>>, vector<1x16x896xbf16>
    %6 = vector.shape_cast %5 : vector<1x16x896xbf16> to vector<16x896xbf16>
    %cst = arith.constant dense<0.000000e+00> : vector<8x896xf32>
    %7 = tpu.matmul %4, %6, %cst {dimension_numbers = #tpu.dot_dimension_numbers<[1], [0], [0], [1], [0, 0, 1, 1], [], []>} : vector<8x16xbf16>, vector<16x896xbf16>, vector<8x896xf32> -> vector<8x896xf32>
    %c1 = arith.constant 1 : index
    %c0_6 = arith.constant 0 : index
    %c0_7 = arith.constant 0 : index
    %8 = vector.load %arg3[%c1, %c0_6, %c0_7] : memref<9x8x16xbf16, #tpu.memory_space<vmem>>, vector<1x8x16xbf16>
    %9 = vector.shape_cast %8 : vector<1x8x16xbf16> to vector<8x16xbf16>
    %c0_8 = arith.constant 0 : index
    %c0_9 = arith.constant 0 : index
    %c1_10 = arith.constant 1 : index
    %10 = vector.load %arg2[%c0_8, %c0_9, %c1_10] : memref<1x16x1024xbf16, #tpu.memory_space<vmem>>, vector<1x16x896xbf16>
    %11 = vector.shape_cast %10 : vector<1x16x896xbf16> to vector<16x896xbf16>
    %cst_11 = arith.constant dense<0.000000e+00> : vector<8x896xf32>
    %12 = tpu.matmul %9, %11, %cst_11 {dimension_numbers = #tpu.dot_dimension_numbers<[1], [0], [0], [1], [0, 0, 1, 1], [], []>} : vector<8x16xbf16>, vector<16x896xbf16>, vector<8x896xf32> -> vector<8x896xf32>
    %13 = arith.addf %7, %12 : vector<8x896xf32>
    %c2 = arith.constant 2 : index
    %c0_12 = arith.constant 0 : index
    %c0_13 = arith.constant 0 : index
    %14 = vector.load %arg3[%c2, %c0_12, %c0_13] : memref<9x8x16xbf16, #tpu.memory_space<vmem>>, vector<1x8x16xbf16>
    %15 = vector.shape_cast %14 : vector<1x8x16xbf16> to vector<8x16xbf16>
    %c0_14 = arith.constant 0 : index
    %c0_15 = arith.constant 0 : index
    %c2_16 = arith.constant 2 : index
    %16 = vector.load %arg2[%c0_14, %c0_15, %c2_16] : memref<1x16x1024xbf16, #tpu.memory_space<vmem>>, vector<1x16x896xbf16>
    %17 = vector.shape_cast %16 : vector<1x16x896xbf16> to vector<16x896xbf16>
    %cst_17 = arith.constant dense<0.000000e+00> : vector<8x896xf32>
    %18 = tpu.matmul %15, %17, %cst_17 {dimension_numbers = #tpu.dot_dimension_numbers<[1], [0], [0], [1], [0, 0, 1, 1], [], []>} : vector<8x16xbf16>, vector<16x896xbf16>, vector<8x896xf32> -> vector<8x896xf32>
    %19 = arith.addf %13, %18 : vector<8x896xf32>
    %c3 = arith.constant 3 : index
    %c0_18 = arith.constant 0 : index
    %c0_19 = arith.constant 0 : index
    %20 = vector.load %arg3[%c3, %c0_18, %c0_19] : memref<9x8x16xbf16, #tpu.memory_space<vmem>>, vector<1x8x16xbf16>
    %21 = vector.shape_cast %20 : vector<1x8x16xbf16> to vector<8x16xbf16>
    %c0_20 = arith.constant 0 : index
    %c0_21 = arith.constant 0 : index
    %c10 = arith.constant 10 : index
    %22 = vector.load %arg2[%c0_20, %c0_21, %c10] : memref<1x16x1024xbf16, #tpu.memory_space<vmem>>, vector<1x16x896xbf16>
    %23 = vector.shape_cast %22 : vector<1x16x896xbf16> to vector<16x896xbf16>
    %cst_22 = arith.constant dense<0.000000e+00> : vector<8x896xf32>
    %24 = tpu.matmul %21, %23, %cst_22 {dimension_numbers = #tpu.dot_dimension_numbers<[1], [0], [0], [1], [0, 0, 1, 1], [], []>} : vector<8x16xbf16>, vector<16x896xbf16>, vector<8x896xf32> -> vector<8x896xf32>
    %25 = arith.addf %19, %24 : vector<8x896xf32>
    %c4 = arith.constant 4 : index
    %c0_23 = arith.constant 0 : index
    %c0_24 = arith.constant 0 : index
    %26 = vector.load %arg3[%c4, %c0_23, %c0_24] : memref<9x8x16xbf16, #tpu.memory_space<vmem>>, vector<1x8x16xbf16>
    %27 = vector.shape_cast %26 : vector<1x8x16xbf16> to vector<8x16xbf16>
    %c0_25 = arith.constant 0 : index
    %c0_26 = arith.constant 0 : index
    %c11 = arith.constant 11 : index
    %28 = vector.load %arg2[%c0_25, %c0_26, %c11] : memref<1x16x1024xbf16, #tpu.memory_space<vmem>>, vector<1x16x896xbf16>
    %29 = vector.shape_cast %28 : vector<1x16x896xbf16> to vector<16x896xbf16>
    %cst_27 = arith.constant dense<0.000000e+00> : vector<8x896xf32>
    %30 = tpu.matmul %27, %29, %cst_27 {dimension_numbers = #tpu.dot_dimension_numbers<[1], [0], [0], [1], [0, 0, 1, 1], [], []>} : vector<8x16xbf16>, vector<16x896xbf16>, vector<8x896xf32> -> vector<8x896xf32>
    %31 = arith.addf %25, %30 : vector<8x896xf32>
    %c5 = arith.constant 5 : index
    %c0_28 = arith.constant 0 : index
    %c0_29 = arith.constant 0 : index
    %32 = vector.load %arg3[%c5, %c0_28, %c0_29] : memref<9x8x16xbf16, #tpu.memory_space<vmem>>, vector<1x8x16xbf16>
    %33 = vector.shape_cast %32 : vector<1x8x16xbf16> to vector<8x16xbf16>
    %c0_30 = arith.constant 0 : index
    %c0_31 = arith.constant 0 : index
    %c12 = arith.constant 12 : index
    %34 = vector.load %arg2[%c0_30, %c0_31, %c12] : memref<1x16x1024xbf16, #tpu.memory_space<vmem>>, vector<1x16x896xbf16>
    %35 = vector.shape_cast %34 : vector<1x16x896xbf16> to vector<16x896xbf16>
    %cst_32 = arith.constant dense<0.000000e+00> : vector<8x896xf32>
    %36 = tpu.matmul %33, %35, %cst_32 {dimension_numbers = #tpu.dot_dimension_numbers<[1], [0], [0], [1], [0, 0, 1, 1], [], []>} : vector<8x16xbf16>, vector<16x896xbf16>, vector<8x896xf32> -> vector<8x896xf32>
    %37 = arith.addf %31, %36 : vector<8x896xf32>
    %c6 = arith.constant 6 : index
    %c0_33 = arith.constant 0 : index
    %c0_34 = arith.constant 0 : index
    %38 = vector.load %arg3[%c6, %c0_33, %c0_34] : memref<9x8x16xbf16, #tpu.memory_space<vmem>>, vector<1x8x16xbf16>
    %39 = vector.shape_cast %38 : vector<1x8x16xbf16> to vector<8x16xbf16>
    %c0_35 = arith.constant 0 : index
    %c0_36 = arith.constant 0 : index
    %c20 = arith.constant 20 : index
    %40 = vector.load %arg2[%c0_35, %c0_36, %c20] : memref<1x16x1024xbf16, #tpu.memory_space<vmem>>, vector<1x16x896xbf16>
    %41 = vector.shape_cast %40 : vector<1x16x896xbf16> to vector<16x896xbf16>
    %cst_37 = arith.constant dense<0.000000e+00> : vector<8x896xf32>
    %42 = tpu.matmul %39, %41, %cst_37 {dimension_numbers = #tpu.dot_dimension_numbers<[1], [0], [0], [1], [0, 0, 1, 1], [], []>} : vector<8x16xbf16>, vector<16x896xbf16>, vector<8x896xf32> -> vector<8x896xf32>
    %43 = arith.addf %37, %42 : vector<8x896xf32>
    %c7 = arith.constant 7 : index
    %c0_38 = arith.constant 0 : index
    %c0_39 = arith.constant 0 : index
    %44 = vector.load %arg3[%c7, %c0_38, %c0_39] : memref<9x8x16xbf16, #tpu.memory_space<vmem>>, vector<1x8x16xbf16>
    %45 = vector.shape_cast %44 : vector<1x8x16xbf16> to vector<8x16xbf16>
    %c0_40 = arith.constant 0 : index
    %c0_41 = arith.constant 0 : index
    %c21 = arith.constant 21 : index
    %46 = vector.load %arg2[%c0_40, %c0_41, %c21] : memref<1x16x1024xbf16, #tpu.memory_space<vmem>>, vector<1x16x896xbf16>
    %47 = vector.shape_cast %46 : vector<1x16x896xbf16> to vector<16x896xbf16>
    %cst_42 = arith.constant dense<0.000000e+00> : vector<8x896xf32>
    %48 = tpu.matmul %45, %47, %cst_42 {dimension_numbers = #tpu.dot_dimension_numbers<[1], [0], [0], [1], [0, 0, 1, 1], [], []>} : vector<8x16xbf16>, vector<16x896xbf16>, vector<8x896xf32> -> vector<8x896xf32>
    %49 = arith.addf %43, %48 : vector<8x896xf32>
    %c8 = arith.constant 8 : index
    %c0_43 = arith.constant 0 : index
    %c0_44 = arith.constant 0 : index
    %50 = vector.load %arg3[%c8, %c0_43, %c0_44] : memref<9x8x16xbf16, #tpu.memory_space<vmem>>, vector<1x8x16xbf16>
    %51 = vector.shape_cast %50 : vector<1x8x16xbf16> to vector<8x16xbf16>
    %c0_45 = arith.constant 0 : index
    %c0_46 = arith.constant 0 : index
    %c22 = arith.constant 22 : index
    %52 = vector.load %arg2[%c0_45, %c0_46, %c22] : memref<1x16x1024xbf16, #tpu.memory_space<vmem>>, vector<1x16x896xbf16>
    %53 = vector.shape_cast %52 : vector<1x16x896xbf16> to vector<16x896xbf16>
    %cst_47 = arith.constant dense<0.000000e+00> : vector<8x896xf32>
    %54 = tpu.matmul %51, %53, %cst_47 {dimension_numbers = #tpu.dot_dimension_numbers<[1], [0], [0], [1], [0, 0, 1, 1], [], []>} : vector<8x16xbf16>, vector<16x896xbf16>, vector<8x896xf32> -> vector<8x896xf32>
    %55 = arith.addf %49, %54 : vector<8x896xf32>
    %c0_48 = arith.constant 0 : index
    %c0_49 = arith.constant 0 : index
    %56 = vector.load %arg4[%c0_48, %c0_49] : memref<1x896xf32, #tpu.memory_space<vmem>>, vector<1x896xf32>
    %57 = vector.broadcast %56 : vector<1x896xf32> to vector<8x896xf32>
    %58 = arith.mulf %55, %57 : vector<8x896xf32>
    %c0_50 = arith.constant 0 : index
    %c0_51 = arith.constant 0 : index
    %59 = vector.load %arg6[%c0_50, %c0_51] : memref<8x1xf32, #tpu.memory_space<vmem>>, vector<8x1xf32>
    %cst_52 = arith.constant dense<0.000000e+00> : vector<8xf32>
    %60 = vector.multi_reduction <add>, %58, %cst_52 [1] : vector<8x896xf32> to vector<8xf32>
    %61 = vector.shape_cast %60 : vector<8xf32> to vector<8x1xf32>
    %62 = arith.addf %59, %61 : vector<8x1xf32>
    %c0_53 = arith.constant 0 : index
    %c0_54 = arith.constant 0 : index
    %63 = vector.load %arg6[%c0_53, %c0_54] : memref<8x1xf32, #tpu.memory_space<vmem>>, vector<8x1xf32>
    tpu.vector_store %arg6[%c0_53, %c0_54], %62 {strides = array<i32>} : memref<8x1xf32, #tpu.memory_space<vmem>>, vector<8x1xf32>,
    %c0_55 = arith.constant 0 : index
    %c0_56 = arith.constant 0 : index
    %64 = vector.load %arg7[%c0_55, %c0_56] : memref<8x1xf32, #tpu.memory_space<vmem>>, vector<8x1xf32>
    %65 = arith.mulf %58, %58 : vector<8x896xf32>
    %cst_57 = arith.constant dense<0.000000e+00> : vector<8xf32>
    %66 = vector.multi_reduction <add>, %65, %cst_57 [1] : vector<8x896xf32> to vector<8xf32>
    %67 = vector.shape_cast %66 : vector<8xf32> to vector<8x1xf32>
    %68 = arith.addf %64, %67 : vector<8x1xf32>
    %c0_58 = arith.constant 0 : index
    %c0_59 = arith.constant 0 : index
    %69 = vector.load %arg7[%c0_58, %c0_59] : memref<8x1xf32, #tpu.memory_space<vmem>>, vector<8x1xf32>
    tpu.vector_store %arg7[%c0_58, %c0_59], %68 {strides = array<i32>} : memref<8x1xf32, #tpu.memory_space<vmem>>, vector<8x1xf32>,
    %c896_i32 = arith.constant 896 : i32
    %70 = arith.muli %arg1, %c896_i32 : i32
    %71 = tpu.assume_multiple %70, 128 : i32
    %c0_60 = arith.constant 0 : index
    %c0_61 = arith.constant 0 : index
    %72 = arith.index_cast %71 : i32 to index
    %73 = vector.load %arg5[%c0_60, %c0_61, %72] : memref<1x8x896xf32, #tpu.memory_space<vmem>>, vector<1x8x896xf32>
    %74 = vector.shape_cast %73 : vector<1x8x896xf32> to vector<8x896xf32>
    %75 = vector.shape_cast %58 : vector<8x896xf32> to vector<1x8x896xf32>
    tpu.vector_store %arg5[%c0_60, %c0_61, %72], %75 {strides = array<i32>} : memref<1x8x896xf32, #tpu.memory_space<vmem>>, vector<1x8x896xf32>,
    %c0_i32_62 = arith.constant 0 : i32
    %76 = arith.cmpi eq, %arg1, %c0_i32_62 : i32
    %77 = arith.extui %76 : i1 to i32
    %c0_i32_63 = arith.constant 0 : i32
    %78 = arith.cmpi ne, %77, %c0_i32_63 : i32
    scf.if %78 {
      %c0_64 = arith.constant 0 : index
      %c0_65 = arith.constant 0 : index
      %79 = vector.load %arg6[%c0_64, %c0_65] : memref<8x1xf32, #tpu.memory_space<vmem>>, vector<8x1xf32>
      %cst_66 = arith.constant 0.001953125 : f32
      %80 = vector.broadcast %cst_66 : f32 to vector<8x1xf32>
      %81 = arith.mulf %79, %80 : vector<8x1xf32>
      %c0_67 = arith.constant 0 : index
      %c0_68 = arith.constant 0 : index
      %82 = vector.load %arg7[%c0_67, %c0_68] : memref<8x1xf32, #tpu.memory_space<vmem>>, vector<8x1xf32>
      %cst_69 = arith.constant 0.001953125 : f32
      %83 = vector.broadcast %cst_69 : f32 to vector<8x1xf32>
      %84 = arith.mulf %82, %83 : vector<8x1xf32>
      %85 = arith.mulf %81, %81 : vector<8x1xf32>
      %86 = arith.subf %84, %85 : vector<8x1xf32>
      %cst_70 = arith.constant 0.000000e+00 : f32
      %87 = vector.broadcast %cst_70 : f32 to vector<8x1xf32>
      %88 = arith.maximumf %86, %87 : vector<8x1xf32>
      %cst_71 = arith.constant 9.99999974E-6 : f32
      %89 = vector.broadcast %cst_71 : f32 to vector<8x1xf32>
      %90 = arith.addf %88, %89 : vector<8x1xf32>
      %91 = math.rsqrt %90 : vector<8x1xf32>
      %c0_72 = arith.constant 0 : index
      %c0_73 = arith.constant 0 : index
      %c0_74 = arith.constant 0 : index
      %92 = vector.load %arg5[%c0_72, %c0_73, %c0_74] : memref<1x8x896xf32, #tpu.memory_space<vmem>>, vector<1x8x896xf32>
      %93 = vector.shape_cast %92 : vector<1x8x896xf32> to vector<8x896xf32>
      %94 = vector.broadcast %81 : vector<8x1xf32> to vector<8x896xf32>
      %95 = arith.subf %93, %94 : vector<8x896xf32>
      %96 = vector.broadcast %91 : vector<8x1xf32> to vector<8x896xf32>
      %97 = arith.mulf %95, %96 : vector<8x896xf32>
      %cst_75 = arith.constant 0.000000e+00 : f32
      %98 = vector.broadcast %cst_75 : f32 to vector<8x896xf32>
      %99 = arith.cmpf ogt, %97, %98 : vector<8x896xf32>
      %cst_76 = arith.constant 1.000000e-01 : f32
      %100 = vector.broadcast %cst_76 : f32 to vector<8x896xf32>
      %101 = arith.mulf %100, %97 : vector<8x896xf32>
      %102 = arith.select %99, %97, %101 : vector<8x896xi1>, vector<8x896xf32>
      %c0_77 = arith.constant 0 : index
      %c0_78 = arith.constant 0 : index
      %c0_79 = arith.constant 0 : index
      %103 = vector.load %arg5[%c0_77, %c0_78, %c0_79] : memref<1x8x896xf32, #tpu.memory_space<vmem>>, vector<1x8x896xf32>
      %104 = vector.shape_cast %103 : vector<1x8x896xf32> to vector<8x896xf32>
      %105 = vector.shape_cast %102 : vector<8x896xf32> to vector<1x8x896xf32>
      tpu.vector_store %arg5[%c0_77, %c0_78, %c0_79], %105 {strides = array<i32>} : memref<1x8x896xf32, #tpu.memory_space<vmem>>, vector<1x8x896xf32>,
    } else {
    }
    return
  }
  func.func @transform_0(%arg0: i32, %arg1: i32) -> (i32, i32, i32) {
    %c0_i32 = arith.constant 0 : i32
    %c0_i32_0 = arith.constant 0 : i32
    return %arg0, %c0_i32, %arg1 : i32, i32, i32
  }
  func.func @transform_1(%arg0: i32, %arg1: i32) -> (i32, i32, i32) {
    %c0_i32 = arith.constant 0 : i32
    %c0_i32_0 = arith.constant 0 : i32
    %c0_i32_1 = arith.constant 0 : i32
    %c0_i32_2 = arith.constant 0 : i32
    return %c0_i32, %c0_i32_0, %c0_i32_1 : i32, i32, i32
  }
  func.func @transform_2(%arg0: i32, %arg1: i32) -> (i32, i32) {
    %c0_i32 = arith.constant 0 : i32
    %c0_i32_0 = arith.constant 0 : i32
    %c0_i32_1 = arith.constant 0 : i32
    return %c0_i32, %c0_i32_0 : i32, i32
  }
  func.func @transform_3(%arg0: i32, %arg1: i32) -> (i32, i32, i32) {
    %c0_i32 = arith.constant 0 : i32
    %c0_i32_0 = arith.constant 0 : i32
    %c0_i32_1 = arith.constant 0 : i32
    return %arg0, %c0_i32, %c0_i32_0 : i32, i32, i32
  }
}

</mosaic_0001>

<llo_original>
// kernel: tpu_custom_call.1
$region0: #{tpu_custom_call.1}
  #allocation0 [shape = 'u32[]', space=smem, size = 0x4, offset = 0x4, fixed_abs, tag = 'smem constant byte address 0x4 - core index']
  #allocation1 [shape = 'u32[144,128]{1,0:T(1,128)}', space=vmem, size = 0x12000, scoped, tag = 'internal scratch']
  #allocation2 [shape = 'f32[8,1]{1,0:T(8,128)}', space=vmem, size = 0x1000, scoped, tag = 'scratch operand']
  #allocation3 [shape = 'f32[8,1]{1,0:T(8,128)}', space=vmem, size = 0x1000, scoped, tag = 'scratch operand']
  %s0 = inlined_call_operand.hbm [shape: bf16[2,16,1024], index: 0, kind: input, shape index: {}]
  %s1 = inlined_call_operand.hbm [shape: bf16[9,8,16], index: 1, kind: input, shape index: {}]
  %s2 = inlined_call_operand.vmem [shape: f32[1,896], index: 2, kind: input, shape index: {}]
  %s3 = inlined_call_operand.hbm [shape: f32[2,8,896], index: 3, kind: output, shape index: {}]
  %s4 = sld [smem:[#allocation0]]
  $region61: #{tpu_custom_call.1} parent=0
    _
  %s6 = ssub.s32 1, %s4
  %s7 = scalar_select 0, %s6, %s4
  $region1: #{tpu_custom_call.1} parent=0
    #allocation4 [shape = 'u8[65536]{0}', space=vmem, size = 0x10000, scoped, tag = 'input window, operand 0']
    #allocation5 [shape = 's32[2]{0}', space=sflag, size = 0x8, scoped, tag = 'scoped memory for tpu_custom_call.1']
    #allocation6 [shape = 's32[2]{0}', space=sflag, size = 0x8, scoped, tag = 'scoped memory for tpu_custom_call.1']
    #allocation7 [shape = 'u8[18432]{0}', space=vmem, size = 0x4800, scoped, tag = 'input window, operand 1, single buffered']
    #allocation8 [shape = 's32[1]{0}', space=sflag, size = 0x4, scoped, tag = 'scoped memory for tpu_custom_call.1']
    #allocation9 [shape = 'u8[57344]{0}', space=vmem, size = 0xe000, scoped, tag = 'output window, operand 0']
    %8 = vsyncpa [#allocation5], 0
    %s9 = scalar_lea.sflag [#allocation5], 1
    %10 = vsyncpa %s9, 0
    %11 = vsyncpa [#allocation8], 0
    %12 = vsyncpa [#allocation6], 0
    %s13 = scalar_lea.sflag [#allocation6], 1
    %14 = vsyncpa %s13, 0
    loop: start=0, step=1, limit=4
    $region2: #{tpu_custom_call.1} parent=1 // loop_pre_header
      _
    $region3: #{tpu_custom_call.1} parent=1 // loop_header
      %s16 = sphi 0, %s20
      %p17 = scmp.ge.s32.totalorder %s16, 4
      %s23 = sphi 0, %s35
      %s24 = sphi 0, %s31
      %s25 = sphi 0, %s23
      %s26 = sphi 0, %s24
      %s27 = sphi 0, %s25
      %s28 = sphi 0, %s26
      %s40 = sphi 0, %s42
      %s43 = sphi 0, %s40
      %s44 = sphi 0, %s43
      %s60 = sphi 0, %s44
      %s64 = sphi 0, %s64
      %s66 = sphi 0, %s64
      %s67 = sphi 0, %s66
      %s81 = sphi 0, %s67
      %s85 = sphi 0, %s85
      %s87 = sphi 0, %s85
      %s88 = sphi 0, %s87
      %s102 = sphi 0, %s88
      %s108 = sphi 0, %s110
      %s111 = sphi 0, %s108
      %s112 = sphi 0, %s111
      %s128 = sphi 0, %s112
    $region4: #{tpu_custom_call.1} parent=1 // loop_header_branch
      %19 = sbr.rel (%p17) target = $region8
    $region5: #{tpu_custom_call.1} parent=1 // loop_body
      %s21 = ssub.s32 %s16, 1
      %s22 = ssub.s32 %s16, 2
      %s29 = sadd.s32 1, %s24
      %p30 = scmp.ge.s32.totalorder %s29, 1
      %s31 = scalar_select %p30, 0, %s29
      %s32 = sadd.s32 1, %s23
      %s33 = scalar_select %p30, %s32, %s23
      %p34 = scmp.ge.s32.totalorder %s33, 2
      %s35 = scalar_select %p34, 0, %s33
      %s36 = ssub.s32 %s23, %s35
      %s37 = ssub.s32 %s24, %s31
      %s38 = sor.u32 %s36, %s37
      %p39 = scmp.eq.s32.totalorder %s38, 0
      %s41 = sadd.s32 %s40, 1
      %s42 = scalar_select %p39, %s40, %s41
      %p45 = pneg %p39
      %p46 = scmp.eq.s32.totalorder %s16, 1
      %p47 = por %p45, %p46
      %p48 = scmp.ne.s32.totalorder %s40, %s43
      %p49 = scmp.eq.s32.totalorder %s16, 0
      %p50 = por %p48, %p49
      %p51 = scmp.ne.s32.totalorder %s40, %s43
      %p52 = scmp.eq.s32.totalorder %s21, 1
      %p53 = por %p51, %p52
      %p54 = scmp.ne.s32.totalorder %s43, %s44
      %p55 = scmp.eq.s32.totalorder %s21, 0
      %p56 = por %p54, %p55
      %p57 = scmp.ne.s32.totalorder %s43, %s44
      %p58 = scmp.eq.s32.totalorder %s22, 1
      %p59 = por %p57, %p58
      %p61 = scmp.ne.s32.totalorder %s44, %s60
      %p62 = scmp.eq.s32.totalorder %s22, 0
      %p63 = por %p61, %p62
      %s65 = sadd.s32 %s64, 1
      %p68 = scmp.eq.s32.totalorder %s16, 1
      %p69 = scmp.ne.s32.totalorder %s64, %s66
      %p70 = scmp.eq.s32.totalorder %s16, 0
      %p71 = por %p69, %p70
      %p72 = scmp.ne.s32.totalorder %s64, %s66
      %p73 = scmp.eq.s32.totalorder %s21, 1
      %p74 = por %p72, %p73
      %p75 = scmp.ne.s32.totalorder %s66, %s67
      %p76 = scmp.eq.s32.totalorder %s21, 0
      %p77 = por %p75, %p76
      %p78 = scmp.ne.s32.totalorder %s66, %s67
      %p79 = scmp.eq.s32.totalorder %s22, 1
      %p80 = por %p78, %p79
      %p82 = scmp.ne.s32.totalorder %s67, %s81
      %p83 = scmp.eq.s32.totalorder %s22, 0
      %p84 = por %p82, %p83
      %s86 = sadd.s32 %s85, 1
      %p89 = scmp.eq.s32.totalorder %s16, 1
      %p90 = scmp.ne.s32.totalorder %s85, %s87
      %p91 = scmp.eq.s32.totalorder %s16, 0
      %p92 = por %p90, %p91
      %p93 = scmp.ne.s32.totalorder %s85, %s87
      %p94 = scmp.eq.s32.totalorder %s21, 1
      %p95 = por %p93, %p94
      %p96 = scmp.ne.s32.totalorder %s87, %s88
      %p97 = scmp.eq.s32.totalorder %s21, 0
      %p98 = por %p96, %p97
      %p99 = scmp.ne.s32.totalorder %s87, %s88
      %p100 = scmp.eq.s32.totalorder %s22, 1
      %p101 = por %p99, %p100
      %p103 = scmp.ne.s32.totalorder %s88, %s102
      %p104 = scmp.eq.s32.totalorder %s22, 0
      %p105 = por %p103, %p104
      %s106 = ssub.s32 %s23, %s35
      %p107 = scmp.eq.s32.totalorder %s106, 0
      %s109 = sadd.s32 %s108, 1
      %s110 = scalar_select %p107, %s108, %s109
      %p113 = pneg %p107
      %p114 = scmp.eq.s32.totalorder %s16, 1
      %p115 = por %p113, %p114
      %p116 = scmp.ne.s32.totalorder %s108, %s111
      %p117 = scmp.eq.s32.totalorder %s16, 0
      %p118 = por %p116, %p117
      %p119 = scmp.ne.s32.totalorder %s108, %s111
      %p120 = scmp.eq.s32.totalorder %s21, 1
      %p121 = por %p119, %p120
      %p122 = scmp.ne.s32.totalorder %s111, %s112
      %p123 = scmp.eq.s32.totalorder %s21, 0
      %p124 = por %p122, %p123
      %p125 = scmp.ne.s32.totalorder %s111, %s112
      %p126 = scmp.eq.s32.totalorder %s22, 1
      %p127 = por %p125, %p126
      %p129 = scmp.ne.s32.totalorder %s112, %s128
      %p130 = scmp.eq.s32.totalorder %s22, 0
      %p131 = por %p129, %p130
      %p132 = scmp.le.s32.totalorder 1, %s16
      %p133 = scmp.lt.s32.totalorder %s16, 3
      %p134 = pnand %p132, %p133
      %p135 = pneg %p134
      // Predicated region
      $region9: #{tpu_custom_call.1} parent=5 // pred_check
        _
      $region10: #{tpu_custom_call.1} parent=5 // pred_check_branch
        %137 = sbr.rel (%p134) target = $region12
      $region11: #{tpu_custom_call.1} parent=5 // pred_region
        %s138 = ssub.s32 %s16, 1
        // Predicated region
        $region13: #{tpu_custom_call.1} parent=11 // pred_check
          %p139 = pneg %p77
        $region14: #{tpu_custom_call.1} parent=11 // pred_check_branch
          %141 = sbr.rel (%p139) target = $region16
        $region15: #{tpu_custom_call.1} parent=11 // pred_region
          %s143 = ssub.s32 576, 576
          %144 = vsyncadd [#allocation8], %s143
          %s145 = sshll.u32 [#allocation7], 4
          %s146 = int_to_ptr.vmem [resolvable:$true] %s145
          %151 = dma.hbm_to_vmem [thread:$0]  %s1, 576, %s146, [#allocation8], 64, 64, 4
        $region16: #{tpu_custom_call.1} parent=11 // pred_fallthru
          _
        // Predicated region
        $region17: #{tpu_custom_call.1} parent=11 // pred_check
          %p152 = pneg %p98
        $region18: #{tpu_custom_call.1} parent=11 // pred_check_branch
          %154 = sbr.rel (%p152) target = $region20
        $region19: #{tpu_custom_call.1} parent=11 // pred_region
          _
        $region20: #{tpu_custom_call.1} parent=11 // pred_fallthru
          _
      $region12: #{tpu_custom_call.1} parent=5 // pred_fallthru
        _
      %p155 = scmp.lt.s32.totalorder %s16, 2
      // Predicated region
      $region21: #{tpu_custom_call.1} parent=5 // pred_check
        %p156 = pneg %p155
      $region22: #{tpu_custom_call.1} parent=5 // pred_check_branch
        %158 = sbr.rel (%p156) target = $region24
      $region23: #{tpu_custom_call.1} parent=5 // pred_region
        // Predicated region
        $region25: #{tpu_custom_call.1} parent=23 // pred_check
          %p159 = pneg %p50
        $region26: #{tpu_custom_call.1} parent=23 // pred_check_branch
          %161 = sbr.rel (%p159) target = $region28
        $region27: #{tpu_custom_call.1} parent=23 // pred_region
          %s162 = sand.u32 %s40, 1
          %s163 = scalar_lea.sflag [#allocation5], %s162
          %s164 = sand.u32 %s40, 1
          %s165 = smul.addr %s164, 64
          %s166 = scalar_lea.vmem [#allocation4], %s165
          %s167 = smul.u32 8, %s24
          %s169 = ssub.s32 1024, 1024
          %170 = vsyncadd %s163, %s169
          %s171 = smul.addr %s23, 16
          %s172 = sadd.s32 %s167, %s171
          %s173 = smul.addr %s172, 64
          %s174 = scalar_lea.hbm %s0, %s173
          %s175 = sshll.u32 %s166, 4
          %s176 = int_to_ptr.vmem [resolvable:$true] %s175
          %181 = dma.hbm_to_vmem [thread:$0]  %s174, 1024, %s176, %s163, 512, 512, 32
        $region28: #{tpu_custom_call.1} parent=23 // pred_fallthru
          _
      $region24: #{tpu_custom_call.1} parent=5 // pred_fallthru
        _
      %p182 = scmp.le.s32.totalorder 1, %s16
      %p183 = scmp.lt.s32.totalorder %s16, 3
      %p184 = pnand %p182, %p183
      %p185 = pneg %p184
      // Predicated region
      $region29: #{tpu_custom_call.1} parent=5 // pred_check
        _
      $region30: #{tpu_custom_call.1} parent=5 // pred_check_branch
        %187 = sbr.rel (%p184) target = $region32
      $region31: #{tpu_custom_call.1} parent=5 // pred_region
        %s188 = ssub.s32 %s16, 1
        %s189 = sand.u32 %s43, 1
        %s190 = scalar_lea.sflag [#allocation5], %s189
        %s191 = sand.u32 %s43, 1
        %s192 = smul.addr %s191, 64
        %s193 = scalar_lea.vmem [#allocation4], %s192
        // Predicated region
        $region33: #{tpu_custom_call.1} parent=31 // pred_check
          %p194 = pneg %p56
        $region34: #{tpu_custom_call.1} parent=31 // pred_check_branch
          %196 = sbr.rel (%p194) target = $region36
        $region35: #{tpu_custom_call.1} parent=31 // pred_region
          %197 = dma.done %s190, 1024
        $region36: #{tpu_custom_call.1} parent=31 // pred_fallthru
          _
        // Predicated region
        $region37: #{tpu_custom_call.1} parent=31 // pred_check
          %p198 = pneg %p77
        $region38: #{tpu_custom_call.1} parent=31 // pred_check_branch
          %200 = sbr.rel (%p198) target = $region40
        $region39: #{tpu_custom_call.1} parent=31 // pred_region
          %201 = dma.done [#allocation8], 576
        $region40: #{tpu_custom_call.1} parent=31 // pred_fallthru
          _
        %s202 = sand.u32 %s43, 1
        %s203 = scalar_lea.sflag [#allocation5], %s202
        %s204 = sand.u32 %s43, 1
        %s205 = smul.addr %s204, 64
        %s206 = scalar_lea.vmem [#allocation4], %s205
        %p207 = pneg %p56
        %p208 = pneg %p53
        %p209 = pneg %p77
        %p210 = pneg %p74
        %p211 = pneg %p98
        %p212 = pneg %p95
        %p213 = pneg %p124
        %p214 = pneg %p121
        %s215 = sand.u32 %s111, 1
        %s216 = scalar_lea.sflag [#allocation6], %s215
        %s217 = sand.u32 %s111, 1
        %s218 = smul.addr %s217, 56
        %s219 = scalar_lea.vmem [#allocation9], %s218
        %s220 = smul.u32 8, %s26
        %p222 = scmp.eq.s32.totalorder %s26, 0
        // Predicated region
        $region41: #{tpu_custom_call.1} parent=31 // pred_check
          %p223 = pneg %p222
        $region42: #{tpu_custom_call.1} parent=31 // pred_check_branch
          %225 = sbr.rel (%p223) target = $region44
        $region43: #{tpu_custom_call.1} parent=31 // pred_region
          %vm226 = vcmask 7168
          %227 = vst.msk [vmem:[#allocation2] sm:$0xff] %vm226, 0.0
          %228 = vst.msk [vmem:[#allocation3] sm:$0xff] %vm226, 0.0
        $region44: #{tpu_custom_call.1} parent=31 // pred_fallthru
          _
        %v229 = vld [vmem:[#allocation7] sm:$0xf]
        %v230 = vld [vmem:[%s193] sm:$0xff]
        %v231 = vld [vmem:[%s193 + $0x8] sm:$0xff]
        %v232 = vld [vmem:[%s193 + $0x10] sm:$0xff]
        %v233 = vld [vmem:[%s193 + $0x18] sm:$0xf]
        %v234 = vld [vmem:[%s193 + $0x20] sm:$0xff]
        %v235 = vld [vmem:[%s193 + $0x28] sm:$0xff]
        %v236 = vld [vmem:[%s193 + $0x30] sm:$0xff]
        %v237 = vld [vmem:[%s193 + $0x38] sm:$0xf]
        %s238 = scalar_lea.vmem [#allocation7], 4
        %v239 = vld [vmem:[%s238] sm:$0xf]
        %v240 = vld [vmem:[%s193] sm:$0xff]
        %v241 = vld [vmem:[%s193 + $0x8] sm:$0xff]
        %v242 = vld [vmem:[%s193 + $0x10] sm:$0xff]
        %v243 = vld [vmem:[%s193 + $0x18] sm:$0xff]
        %v244 = vld [vmem:[%s193 + $0x20] sm:$0xff]
        %v245 = vld [vmem:[%s193 + $0x28] sm:$0xff]
        %v246 = vld [vmem:[%s193 + $0x30] sm:$0xff]
        %v247 = vld [vmem:[%s193 + $0x38] sm:$0xff]
        %v256 = vunpack.c.l.b16 %v240
        %v257 = vunpack.c.h.b16 %v240
        %v258 = vunpack.c.l.b16 %v241
        %v259 = vunpack.c.h.b16 %v241
        %v260 = vunpack.c.l.b16 %v242
        %v261 = vunpack.c.h.b16 %v242
        %v262 = vunpack.c.l.b16 %v243
        %v263 = vunpack.c.h.b16 %v243
        %v264 = vunpack.c.l.b16 %v244
        %v265 = vunpack.c.h.b16 %v244
        %v266 = vunpack.c.l.b16 %v245
        %v267 = vunpack.c.h.b16 %v245
        %v268 = vunpack.c.l.b16 %v246
        %v269 = vunpack.c.h.b16 %v246
        %v270 = vunpack.c.l.b16 %v247
        %v271 = vunpack.c.h.b16 %v247
        %v272 = vpack.c.b16 %v264, %v256
        %v273 = vpack.c.b16 %v265, %v257
        %v274 = vpack.c.b16 %v266, %v258
        %v275 = vpack.c.b16 %v267, %v259
        %v276 = vpack.c.b16 %v268, %v260
        %v277 = vpack.c.b16 %v269, %v261
        %v278 = vpack.c.b16 %v270, %v262
        %v279 = vpack.c.b16 %v271, %v263
        %280 = vrot.lane.b32.xlu0 %v272, 127
        %v281 = vpop.permute.xlu0 %280
        %282 = vrot.lane.b32.xlu0 %v273, 127
        %v283 = vpop.permute.xlu0 %282
        %284 = vrot.lane.b32.xlu0 %v274, 127
        %v285 = vpop.permute.xlu0 %284
        %286 = vrot.lane.b32.xlu0 %v275, 127
        %v287 = vpop.permute.xlu0 %286
        %288 = vrot.lane.b32.xlu0 %v276, 127
        %v289 = vpop.permute.xlu0 %288
        %290 = vrot.lane.b32.xlu0 %v277, 127
        %v291 = vpop.permute.xlu0 %290
        %292 = vrot.lane.b32.xlu0 %v278, 127
        %v293 = vpop.permute.xlu0 %292
        %294 = vrot.lane.b32.xlu0 %v279, 127
        %v295 = vpop.permute.xlu0 %294
        %vm296 = vcmask 1039360
        %v297 = vsel %vm296, %v281, %v283
        %v298 = vsel %vm296, %v283, %v285
        %v299 = vsel %vm296, %v285, %v287
        %v300 = vsel %vm296, %v287, %v289
        %v301 = vsel %vm296, %v289, %v291
        %v302 = vsel %vm296, %v291, %v293
        %v303 = vsel %vm296, %v293, %v295
        %vm311 = vcmask 130048
        %v313 = vsel %vm311, %v239, 0
        %315 = vmatprep.subr.bf16.mxu0 %v298
        %316 = vmatpush1.bf16.msra.mxu0 %v297
        %317 = vmatprep.subr.bf16.mxu0 0
        %318 = vmatpush1.bf16.msra.mxu0 0
        %319 = vmatprep.subr.bf16.mxu0 0
        %320 = vmatpush1.bf16.msra.mxu0 0
        %321 = vmatprep.subr.bf16.mxu0 0
        %322 = vmatpush1.bf16.msra.mxu0 0
        %323 = vmatprep.subr.bf16.mxu0 0
        %324 = vmatpush1.bf16.msra.mxu0 0
        %325 = vmatprep.subr.bf16.mxu0 0
        %326 = vmatpush1.bf16.msra.mxu0 0
        %327 = vmatprep.subr.bf16.mxu0 0
        %328 = vmatpush1.bf16.msra.mxu0 0
        %329 = vmatprep.subr.bf16.mxu0 0
        %330 = vmatpush1.bf16.msra.mxu0 0
        %331 = vmatprep.subr.bf16.mxu0 0
        %332 = vmatpush1.bf16.msra.mxu0 0
        %333 = vmatprep.subr.bf16.mxu0 0
        %334 = vmatpush1.bf16.msra.mxu0 0
        %335 = vmatprep.subr.bf16.mxu0 0
        %336 = vmatpush1.bf16.msra.mxu0 0
        %337 = vmatprep.subr.bf16.mxu0 0
        %338 = vmatpush1.bf16.msra.mxu0 0
        %339 = vmatprep.subr.bf16.mxu0 0
        %340 = vmatpush1.bf16.msra.mxu0 0
        %341 = vmatprep.subr.bf16.mxu0 0
        %342 = vmatpush1.bf16.msra.mxu0 0
        %343 = vmatprep.subr.bf16.mxu0 0
        %344 = vmatpush1.bf16.msra.mxu0 0
        %345 = vmatprep.subr.bf16.mxu0 0
        %346 = vmatpush1.bf16.msra.mxu0 0
        %347 = vmatprep.mubr.bf16.mxu0 0
        %348 = vmatmul.mubr.bf16.gmra.mrb[0].mxu0 %v313
        %v349 = vpop.f32.mrb[0].mxu0
        %v350 = vadd.f32 0.0, %v349
        %v351 = vpop.f32.mrb[0].mxu0
        %v352 = vadd.f32 0.0, %v351
        %v353 = vpop.f32.mrb[0].mxu0
        %v354 = vpop.f32.mrb[0].mxu0
        %355 = vdwg.mxu0
        %356 = vmatprep.subr.bf16.mxu0 %v300
        %357 = vmatpush1.bf16.msra.mxu0 %v299
        %358 = vmatprep.subr.bf16.mxu0 0
        %359 = vmatpush1.bf16.msra.mxu0 0
        %360 = vmatprep.subr.bf16.mxu0 0
        %361 = vmatpush1.bf16.msra.mxu0 0
        %362 = vmatprep.subr.bf16.mxu0 0
        %363 = vmatpush1.bf16.msra.mxu0 0
        %364 = vmatprep.subr.bf16.mxu0 0
        %365 = vmatpush1.bf16.msra.mxu0 0
        %366 = vmatprep.subr.bf16.mxu0 0
        %367 = vmatpush1.bf16.msra.mxu0 0
        %368 = vmatprep.subr.bf16.mxu0 0
        %369 = vmatpush1.bf16.msra.mxu0 0
        %370 = vmatprep.subr.bf16.mxu0 0
        %371 = vmatpush1.bf16.msra.mxu0 0
        %372 = vmatprep.subr.bf16.mxu0 0
        %373 = vmatpush1.bf16.msra.mxu0 0
        %374 = vmatprep.subr.bf16.mxu0 0
        %375 = vmatpush1.bf16.msra.mxu0 0
        %376 = vmatprep.subr.bf16.mxu0 0
        %377 = vmatpush1.bf16.msra.mxu0 0
        %378 = vmatprep.subr.bf16.mxu0 0
        %379 = vmatpush1.bf16.msra.mxu0 0
        %380 = vmatprep.subr.bf16.mxu0 0
        %381 = vmatpush1.bf16.msra.mxu0 0
        %382 = vmatprep.subr.bf16.mxu0 0
        %383 = vmatpush1.bf16.msra.mxu0 0
        %384 = vmatprep.subr.bf16.mxu0 0
        %385 = vmatpush1.bf16.msra.mxu0 0
        %386 = vmatprep.subr.bf16.mxu0 0
        %387 = vmatpush1.bf16.msra.mxu0 0
        %388 = vmatprep.mubr.bf16.mxu0 0
        %389 = vmatmul.mubr.bf16.gmra.mrb[0].mxu0 %v313
        %v390 = vpop.f32.mrb[0].mxu0
        %v391 = vadd.f32 0.0, %v390
        %v392 = vpop.f32.mrb[0].mxu0
        %v393 = vadd.f32 0.0, %v392
        %v394 = vpop.f32.mrb[0].mxu0
        %v395 = vpop.f32.mrb[0].mxu0
        %396 = vdwg.mxu0
        %397 = vmatprep.subr.bf16.mxu0 %v302
        %398 = vmatpush1.bf16.msra.mxu0 %v301
        %399 = vmatprep.subr.bf16.mxu0 0
        %400 = vmatpush1.bf16.msra.mxu0 0
        %401 = vmatprep.subr.bf16.mxu0 0
        %402 = vmatpush1.bf16.msra.mxu0 0
        %403 = vmatprep.subr.bf16.mxu0 0
        %404 = vmatpush1.bf16.msra.mxu0 0
        %405 = vmatprep.subr.bf16.mxu0 0
        %406 = vmatpush1.bf16.msra.mxu0 0
        %407 = vmatprep.subr.bf16.mxu0 0
        %408 = vmatpush1.bf16.msra.mxu0 0
        %409 = vmatprep.subr.bf16.mxu0 0
        %410 = vmatpush1.bf16.msra.mxu0 0
        %411 = vmatprep.subr.bf16.mxu0 0
        %412 = vmatpush1.bf16.msra.mxu0 0
        %413 = vmatprep.subr.bf16.mxu0 0
        %414 = vmatpush1.bf16.msra.mxu0 0
        %415 = vmatprep.subr.bf16.mxu0 0
        %416 = vmatpush1.bf16.msra.mxu0 0
        %417 = vmatprep.subr.bf16.mxu0 0
        %418 = vmatpush1.bf16.msra.mxu0 0
        %419 = vmatprep.subr.bf16.mxu0 0
        %420 = vmatpush1.bf16.msra.mxu0 0
        %421 = vmatprep.subr.bf16.mxu0 0
        %422 = vmatpush1.bf16.msra.mxu0 0
        %423 = vmatprep.subr.bf16.mxu0 0
        %424 = vmatpush1.bf16.msra.mxu0 0
        %425 = vmatprep.subr.bf16.mxu0 0
        %426 = vmatpush1.bf16.msra.mxu0 0
        %427 = vmatprep.subr.bf16.mxu0 0
        %428 = vmatpush1.bf16.msra.mxu0 0
        %429 = vmatprep.mubr.bf16.mxu0 0
        %430 = vmatmul.mubr.bf16.gmra.mrb[0].mxu0 %v313
        %v431 = vpop.f32.mrb[0].mxu0
        %v432 = vadd.f32 0.0, %v431
        %v433 = vpop.f32.mrb[0].mxu0
        %v434 = vadd.f32 0.0, %v433
        %v435 = vpop.f32.mrb[0].mxu0
        %v436 = vpop.f32.mrb[0].mxu0
        %437 = vdwg.mxu0
        %438 = vmatprep.subr.bf16.mxu0 0
        %439 = vmatpush1.bf16.msra.mxu0 %v303
        %440 = vmatprep.subr.bf16.mxu0 0
        %441 = vmatpush1.bf16.msra.mxu0 0
        %442 = vmatprep.subr.bf16.mxu0 0
        %443 = vmatpush1.bf16.msra.mxu0 0
        %444 = vmatprep.subr.bf16.mxu0 0
        %445 = vmatpush1.bf16.msra.mxu0 0
        %446 = vmatprep.subr.bf16.mxu0 0
        %447 = vmatpush1.bf16.msra.mxu0 0
        %448 = vmatprep.subr.bf16.mxu0 0
        %449 = vmatpush1.bf16.msra.mxu0 0
        %450 = vmatprep.subr.bf16.mxu0 0
        %451 = vmatpush1.bf16.msra.mxu0 0
        %452 = vmatprep.subr.bf16.mxu0 0
        %453 = vmatpush1.bf16.msra.mxu0 0
        %454 = vmatprep.subr.bf16.mxu0 0
        %455 = vmatpush1.bf16.msra.mxu0 0
        %456 = vmatprep.subr.bf16.mxu0 0
        %457 = vmatpush1.bf16.msra.mxu0 0
        %458 = vmatprep.subr.bf16.mxu0 0
        %459 = vmatpush1.bf16.msra.mxu0 0
        %460 = vmatprep.subr.bf16.mxu0 0
        %461 = vmatpush1.bf16.msra.mxu0 0
        %462 = vmatprep.subr.bf16.mxu0 0
        %463 = vmatpush1.bf16.msra.mxu0 0
        %464 = vmatprep.subr.bf16.mxu0 0
        %465 = vmatpush1.bf16.msra.mxu0 0
        %466 = vmatprep.subr.bf16.mxu0 0
        %467 = vmatpush1.bf16.msra.mxu0 0
        %468 = vmatprep.subr.bf16.mxu0 0
        %469 = vmatpush1.bf16.msra.mxu0 0
        %470 = vmatprep.mubr.bf16.mxu0 0
        %471 = vmatmul.mubr.bf16.gmra.mrb[0].mxu0 %v313
        %v472 = vpop.f32.mrb[0].mxu0
        %v473 = vadd.f32 0.0, %v472
        %v474 = vpop.f32.mrb[0].mxu0
        %v475 = vpop.f32.mrb[0].mxu0
        %v476 = vpop.f32.mrb[0].mxu0
        %477 = vdwg.mxu0
        %v486 = vunpack.c.l.b16 %v230
        %v487 = vunpack.c.h.b16 %v230
        %v488 = vunpack.c.l.b16 %v231
        %v489 = vunpack.c.h.b16 %v231
        %v490 = vunpack.c.l.b16 %v232
        %v491 = vunpack.c.h.b16 %v232
        %v492 = vunpack.c.l.b16 %v233
        %v493 = vunpack.c.l.b16 %v234
        %v494 = vunpack.c.h.b16 %v234
        %v495 = vunpack.c.l.b16 %v235
        %v496 = vunpack.c.h.b16 %v235
        %v497 = vunpack.c.l.b16 %v236
        %v498 = vunpack.c.h.b16 %v236
        %v499 = vunpack.c.l.b16 %v237
        %v500 = vpack.c.b16 %v493, %v486
        %v501 = vpack.c.b16 %v494, %v487
        %v502 = vpack.c.b16 %v495, %v488
        %v503 = vpack.c.b16 %v496, %v489
        %v504 = vpack.c.b16 %v497, %v490
        %v505 = vpack.c.b16 %v498, %v491
        %v506 = vpack.c.b16 %v499, %v492
        %v515 = vsel %vm311, %v229, 0
        %517 = vmatprep.subr.bf16.mxu0 %v501
        %518 = vmatpush1.bf16.msra.mxu0 %v500
        %519 = vmatprep.subr.bf16.mxu0 0
        %520 = vmatpush1.bf16.msra.mxu0 0
        %521 = vmatprep.subr.bf16.mxu0 0
        %522 = vmatpush1.bf16.msra.mxu0 0
        %523 = vmatprep.subr.bf16.mxu0 0
        %524 = vmatpush1.bf16.msra.mxu0 0
        %525 = vmatprep.subr.bf16.mxu0 0
        %526 = vmatpush1.bf16.msra.mxu0 0
        %527 = vmatprep.subr.bf16.mxu0 0
        %528 = vmatpush1.bf16.msra.mxu0 0
        %529 = vmatprep.subr.bf16.mxu0 0
        %530 = vmatpush1.bf16.msra.mxu0 0
        %531 = vmatprep.subr.bf16.mxu0 0
        %532 = vmatpush1.bf16.msra.mxu0 0
        %533 = vmatprep.subr.bf16.mxu0 0
        %534 = vmatpush1.bf16.msra.mxu0 0
        %535 = vmatprep.subr.bf16.mxu0 0
        %536 = vmatpush1.bf16.msra.mxu0 0
        %537 = vmatprep.subr.bf16.mxu0 0
        %538 = vmatpush1.bf16.msra.mxu0 0
        %539 = vmatprep.subr.bf16.mxu0 0
        %540 = vmatpush1.bf16.msra.mxu0 0
        %541 = vmatprep.subr.bf16.mxu0 0
        %542 = vmatpush1.bf16.msra.mxu0 0
        %543 = vmatprep.subr.bf16.mxu0 0
        %544 = vmatpush1.bf16.msra.mxu0 0
        %545 = vmatprep.subr.bf16.mxu0 0
        %546 = vmatpush1.bf16.msra.mxu0 0
        %547 = vmatprep.subr.bf16.mxu0 0
        %548 = vmatpush1.bf16.msra.mxu0 0
        %549 = vmatprep.mubr.bf16.mxu0 0
        %550 = vmatmul.mubr.bf16.gmra.mrb[0].mxu0 %v515
        %v551 = vpop.f32.mrb[0].mxu0
        %v552 = vadd.f32 %v350, %v551
        %v553 = vpop.f32.mrb[0].mxu0
        %v554 = vadd.f32 %v352, %v553
        %v555 = vpop.f32.mrb[0].mxu0
        %v556 = vpop.f32.mrb[0].mxu0
        %557 = vdwg.mxu0
        %558 = vmatprep.subr.bf16.mxu0 %v503
        %559 = vmatpush1.bf16.msra.mxu0 %v502
        %560 = vmatprep.subr.bf16.mxu0 0
        %561 = vmatpush1.bf16.msra.mxu0 0
        %562 = vmatprep.subr.bf16.mxu0 0
        %563 = vmatpush1.bf16.msra.mxu0 0
        %564 = vmatprep.subr.bf16.mxu0 0
        %565 = vmatpush1.bf16.msra.mxu0 0
        %566 = vmatprep.subr.bf16.mxu0 0
        %567 = vmatpush1.bf16.msra.mxu0 0
        %568 = vmatprep.subr.bf16.mxu0 0
        %569 = vmatpush1.bf16.msra.mxu0 0
        %570 = vmatprep.subr.bf16.mxu0 0
        %571 = vmatpush1.bf16.msra.mxu0 0
        %572 = vmatprep.subr.bf16.mxu0 0
        %573 = vmatpush1.bf16.msra.mxu0 0
        %574 = vmatprep.subr.bf16.mxu0 0
        %575 = vmatpush1.bf16.msra.mxu0 0
        %576 = vmatprep.subr.bf16.mxu0 0
        %577 = vmatpush1.bf16.msra.mxu0 0
        %578 = vmatprep.subr.bf16.mxu0 0
        %579 = vmatpush1.bf16.msra.mxu0 0
        %580 = vmatprep.subr.bf16.mxu0 0
        %581 = vmatpush1.bf16.msra.mxu0 0
        %582 = vmatprep.subr.bf16.mxu0 0
        %583 = vmatpush1.bf16.msra.mxu0 0
        %584 = vmatprep.subr.bf16.mxu0 0
        %585 = vmatpush1.bf16.msra.mxu0 0
        %586 = vmatprep.subr.bf16.mxu0 0
        %587 = vmatpush1.bf16.msra.mxu0 0
        %588 = vmatprep.subr.bf16.mxu0 0
        %589 = vmatpush1.bf16.msra.mxu0 0
        %590 = vmatprep.mubr.bf16.mxu0 0
        %591 = vmatmul.mubr.bf16.gmra.mrb[0].mxu0 %v515
        %v592 = vpop.f32.mrb[0].mxu0
        %v593 = vadd.f32 %v391, %v592
        %v594 = vpop.f32.mrb[0].mxu0
        %v595 = vadd.f32 %v393, %v594
        %v596 = vpop.f32.mrb[0].mxu0
        %v597 = vpop.f32.mrb[0].mxu0
        %598 = vdwg.mxu0
        %599 = vmatprep.subr.bf16.mxu0 %v505
        %600 = vmatpush1.bf16.msra.mxu0 %v504
        %601 = vmatprep.subr.bf16.mxu0 0
        %602 = vmatpush1.bf16.msra.mxu0 0
        %603 = vmatprep.subr.bf16.mxu0 0
        %604 = vmatpush1.bf16.msra.mxu0 0
        %605 = vmatprep.subr.bf16.mxu0 0
        %606 = vmatpush1.bf16.msra.mxu0 0
        %607 = vmatprep.subr.bf16.mxu0 0
        %608 = vmatpush1.bf16.msra.mxu0 0
        %609 = vmatprep.subr.bf16.mxu0 0
        %610 = vmatpush1.bf16.msra.mxu0 0
        %611 = vmatprep.subr.bf16.mxu0 0
        %612 = vmatpush1.bf16.msra.mxu0 0
        %613 = vmatprep.subr.bf16.mxu0 0
        %614 = vmatpush1.bf16.msra.mxu0 0
        %615 = vmatprep.subr.bf16.mxu0 0
        %616 = vmatpush1.bf16.msra.mxu0 0
        %617 = vmatprep.subr.bf16.mxu0 0
        %618 = vmatpush1.bf16.msra.mxu0 0
        %619 = vmatprep.subr.bf16.mxu0 0
        %620 = vmatpush1.bf16.msra.mxu0 0
        %621 = vmatprep.subr.bf16.mxu0 0
        %622 = vmatpush1.bf16.msra.mxu0 0
        %623 = vmatprep.subr.bf16.mxu0 0
        %624 = vmatpush1.bf16.msra.mxu0 0
        %625 = vmatprep.subr.bf16.mxu0 0
        %626 = vmatpush1.bf16.msra.mxu0 0
        %627 = vmatprep.subr.bf16.mxu0 0
        %628 = vmatpush1.bf16.msra.mxu0 0
        %629 = vmatprep.subr.bf16.mxu0 0
        %630 = vmatpush1.bf16.msra.mxu0 0
        %631 = vmatprep.mubr.bf16.mxu0 0
        %632 = vmatmul.mubr.bf16.gmra.mrb[0].mxu0 %v515
        %v633 = vpop.f32.mrb[0].mxu0
        %v634 = vadd.f32 %v432, %v633
        %v635 = vpop.f32.mrb[0].mxu0
        %v636 = vadd.f32 %v434, %v635
        %v637 = vpop.f32.mrb[0].mxu0
        %v638 = vpop.f32.mrb[0].mxu0
        %639 = vdwg.mxu0
        %640 = vmatprep.subr.bf16.mxu0 0
        %641 = vmatpush1.bf16.msra.mxu0 %v506
        %642 = vmatprep.subr.bf16.mxu0 0
        %643 = vmatpush1.bf16.msra.mxu0 0
        %644 = vmatprep.subr.bf16.mxu0 0
        %645 = vmatpush1.bf16.msra.mxu0 0
        %646 = vmatprep.subr.bf16.mxu0 0
        %647 = vmatpush1.bf16.msra.mxu0 0
        %648 = vmatprep.subr.bf16.mxu0 0
        %649 = vmatpush1.bf16.msra.mxu0 0
        %650 = vmatprep.subr.bf16.mxu0 0
        %651 = vmatpush1.bf16.msra.mxu0 0
        %652 = vmatprep.subr.bf16.mxu0 0
        %653 = vmatpush1.bf16.msra.mxu0 0
        %654 = vmatprep.subr.bf16.mxu0 0
        %655 = vmatpush1.bf16.msra.mxu0 0
        %656 = vmatprep.subr.bf16.mxu0 0
        %657 = vmatpush1.bf16.msra.mxu0 0
        %658 = vmatprep.subr.bf16.mxu0 0
        %659 = vmatpush1.bf16.msra.mxu0 0
        %660 = vmatprep.subr.bf16.mxu0 0
        %661 = vmatpush1.bf16.msra.mxu0 0
        %662 = vmatprep.subr.bf16.mxu0 0
        %663 = vmatpush1.bf16.msra.mxu0 0
        %664 = vmatprep.subr.bf16.mxu0 0
        %665 = vmatpush1.bf16.msra.mxu0 0
        %666 = vmatprep.subr.bf16.mxu0 0
        %667 = vmatpush1.bf16.msra.mxu0 0
        %668 = vmatprep.subr.bf16.mxu0 0
        %669 = vmatpush1.bf16.msra.mxu0 0
        %670 = vmatprep.subr.bf16.mxu0 0
        %671 = vmatpush1.bf16.msra.mxu0 0
        %672 = vmatprep.mubr.bf16.mxu0 0
        %673 = vmatmul.mubr.bf16.gmra.mrb[0].mxu0 %v515
        %v674 = vpop.f32.mrb[0].mxu0
        %v675 = vadd.f32 %v473, %v674
        %v676 = vpop.f32.mrb[0].mxu0
        %v677 = vpop.f32.mrb[0].mxu0
        %v678 = vpop.f32.mrb[0].mxu0
        %679 = vdwg.mxu0
        %s680 = scalar_lea.vmem [#allocation7], 8
        %v681 = vld [vmem:[%s680] sm:$0xf]
        %682 = vrot.lane.b32.xlu0 %v272, 126
        %v683 = vpop.permute.xlu0 %682
        %684 = vrot.lane.b32.xlu0 %v273, 126
        %v685 = vpop.permute.xlu0 %684
        %686 = vrot.lane.b32.xlu0 %v274, 126
        %v687 = vpop.permute.xlu0 %686
        %688 = vrot.lane.b32.xlu0 %v275, 126
        %v689 = vpop.permute.xlu0 %688
        %690 = vrot.lane.b32.xlu0 %v276, 126
        %v691 = vpop.permute.xlu0 %690
        %692 = vrot.lane.b32.xlu0 %v277, 126
        %v693 = vpop.permute.xlu0 %692
        %694 = vrot.lane.b32.xlu0 %v278, 126
        %v695 = vpop.permute.xlu0 %694
        %696 = vrot.lane.b32.xlu0 %v279, 126
        %v697 = vpop.permute.xlu0 %696
        %vm698 = vcmask 1031168
        %v699 = vsel %vm698, %v683, %v685
        %v700 = vsel %vm698, %v685, %v687
        %v701 = vsel %vm698, %v687, %v689
        %v702 = vsel %vm698, %v689, %v691
        %v703 = vsel %vm698, %v691, %v693
        %v704 = vsel %vm698, %v693, %v695
        %v705 = vsel %vm698, %v695, %v697
        %v714 = vsel %vm311, %v681, 0
        %716 = vmatprep.subr.bf16.mxu0 %v700
        %717 = vmatpush1.bf16.msra.mxu0 %v699
        %718 = vmatprep.subr.bf16.mxu0 0
        %719 = vmatpush1.bf16.msra.mxu0 0
        %720 = vmatprep.subr.bf16.mxu0 0
        %721 = vmatpush1.bf16.msra.mxu0 0
        %722 = vmatprep.subr.bf16.mxu0 0
        %723 = vmatpush1.bf16.msra.mxu0 0
        %724 = vmatprep.subr.bf16.mxu0 0
        %725 = vmatpush1.bf16.msra.mxu0 0
        %726 = vmatprep.subr.bf16.mxu0 0
        %727 = vmatpush1.bf16.msra.mxu0 0
        %728 = vmatprep.subr.bf16.mxu0 0
        %729 = vmatpush1.bf16.msra.mxu0 0
        %730 = vmatprep.subr.bf16.mxu0 0
        %731 = vmatpush1.bf16.msra.mxu0 0
        %732 = vmatprep.subr.bf16.mxu0 0
        %733 = vmatpush1.bf16.msra.mxu0 0
        %734 = vmatprep.subr.bf16.mxu0 0
        %735 = vmatpush1.bf16.msra.mxu0 0
        %736 = vmatprep.subr.bf16.mxu0 0
        %737 = vmatpush1.bf16.msra.mxu0 0
        %738 = vmatprep.subr.bf16.mxu0 0
        %739 = vmatpush1.bf16.msra.mxu0 0
        %740 = vmatprep.subr.bf16.mxu0 0
        %741 = vmatpush1.bf16.msra.mxu0 0
        %742 = vmatprep.subr.bf16.mxu0 0
        %743 = vmatpush1.bf16.msra.mxu0 0
        %744 = vmatprep.subr.bf16.mxu0 0
        %745 = vmatpush1.bf16.msra.mxu0 0
        %746 = vmatprep.subr.bf16.mxu0 0
        %747 = vmatpush1.bf16.msra.mxu0 0
        %748 = vmatprep.mubr.bf16.mxu0 0
        %749 = vmatmul.mubr.bf16.gmra.mrb[0].mxu0 %v714
        %v750 = vpop.f32.mrb[0].mxu0
        %v751 = vadd.f32 0.0, %v750
        %v752 = vpop.f32.mrb[0].mxu0
        %v753 = vadd.f32 0.0, %v752
        %v754 = vpop.f32.mrb[0].mxu0
        %v755 = vpop.f32.mrb[0].mxu0
        %756 = vdwg.mxu0
        %757 = vmatprep.subr.bf16.mxu0 %v702
        %758 = vmatpush1.bf16.msra.mxu0 %v701
        %759 = vmatprep.subr.bf16.mxu0 0
        %760 = vmatpush1.bf16.msra.mxu0 0
        %761 = vmatprep.subr.bf16.mxu0 0
        %762 = vmatpush1.bf16.msra.mxu0 0
        %763 = vmatprep.subr.bf16.mxu0 0
        %764 = vmatpush1.bf16.msra.mxu0 0
        %765 = vmatprep.subr.bf16.mxu0 0
        %766 = vmatpush1.bf16.msra.mxu0 0
        %767 = vmatprep.subr.bf16.mxu0 0
        %768 = vmatpush1.bf16.msra.mxu0 0
        %769 = vmatprep.subr.bf16.mxu0 0
        %770 = vmatpush1.bf16.msra.mxu0 0
        %771 = vmatprep.subr.bf16.mxu0 0
        %772 = vmatpush1.bf16.msra.mxu0 0
        %773 = vmatprep.subr.bf16.mxu0 0
        %774 = vmatpush1.bf16.msra.mxu0 0
        %775 = vmatprep.subr.bf16.mxu0 0
        %776 = vmatpush1.bf16.msra.mxu0 0
        %777 = vmatprep.subr.bf16.mxu0 0
        %778 = vmatpush1.bf16.msra.mxu0 0
        %779 = vmatprep.subr.bf16.mxu0 0
        %780 = vmatpush1.bf16.msra.mxu0 0
        %781 = vmatprep.subr.bf16.mxu0 0
        %782 = vmatpush1.bf16.msra.mxu0 0
        %783 = vmatprep.subr.bf16.mxu0 0
        %784 = vmatpush1.bf16.msra.mxu0 0
        %785 = vmatprep.subr.bf16.mxu0 0
        %786 = vmatpush1.bf16.msra.mxu0 0
        %787 = vmatprep.subr.bf16.mxu0 0
        %788 = vmatpush1.bf16.msra.mxu0 0
        %789 = vmatprep.mubr.bf16.mxu0 0
        %790 = vmatmul.mubr.bf16.gmra.mrb[0].mxu0 %v714
        %v791 = vpop.f32.mrb[0].mxu0
        %v792 = vadd.f32 0.0, %v791
        %v793 = vpop.f32.mrb[0].mxu0
        %v794 = vadd.f32 0.0, %v793
        %v795 = vpop.f32.mrb[0].mxu0
        %v796 = vpop.f32.mrb[0].mxu0
        %797 = vdwg.mxu0
        %798 = vmatprep.subr.bf16.mxu0 %v704
        %799 = vmatpush1.bf16.msra.mxu0 %v703
        %800 = vmatprep.subr.bf16.mxu0 0
        %801 = vmatpush1.bf16.msra.mxu0 0
        %802 = vmatprep.subr.bf16.mxu0 0
        %803 = vmatpush1.bf16.msra.mxu0 0
        %804 = vmatprep.subr.bf16.mxu0 0
        %805 = vmatpush1.bf16.msra.mxu0 0
        %806 = vmatprep.subr.bf16.mxu0 0
        %807 = vmatpush1.bf16.msra.mxu0 0
        %808 = vmatprep.subr.bf16.mxu0 0
        %809 = vmatpush1.bf16.msra.mxu0 0
        %810 = vmatprep.subr.bf16.mxu0 0
        %811 = vmatpush1.bf16.msra.mxu0 0
        %812 = vmatprep.subr.bf16.mxu0 0
        %813 = vmatpush1.bf16.msra.mxu0 0
        %814 = vmatprep.subr.bf16.mxu0 0
        %815 = vmatpush1.bf16.msra.mxu0 0
        %816 = vmatprep.subr.bf16.mxu0 0
        %817 = vmatpush1.bf16.msra.mxu0 0
        %818 = vmatprep.subr.bf16.mxu0 0
        %819 = vmatpush1.bf16.msra.mxu0 0
        %820 = vmatprep.subr.bf16.mxu0 0
        %821 = vmatpush1.bf16.msra.mxu0 0
        %822 = vmatprep.subr.bf16.mxu0 0
        %823 = vmatpush1.bf16.msra.mxu0 0
        %824 = vmatprep.subr.bf16.mxu0 0
        %825 = vmatpush1.bf16.msra.mxu0 0
        %826 = vmatprep.subr.bf16.mxu0 0
        %827 = vmatpush1.bf16.msra.mxu0 0
        %828 = vmatprep.subr.bf16.mxu0 0
        %829 = vmatpush1.bf16.msra.mxu0 0
        %830 = vmatprep.mubr.bf16.mxu0 0
        %831 = vmatmul.mubr.bf16.gmra.mrb[0].mxu0 %v714
        %v832 = vpop.f32.mrb[0].mxu0
        %v833 = vadd.f32 0.0, %v832
        %v834 = vpop.f32.mrb[0].mxu0
        %v835 = vadd.f32 0.0, %v834
        %v836 = vpop.f32.mrb[0].mxu0
        %v837 = vpop.f32.mrb[0].mxu0
        %838 = vdwg.mxu0
        %839 = vmatprep.subr.bf16.mxu0 0
        %840 = vmatpush1.bf16.msra.mxu0 %v705
        %841 = vmatprep.subr.bf16.mxu0 0
        %842 = vmatpush1.bf16.msra.mxu0 0
        %843 = vmatprep.subr.bf16.mxu0 0
        %844 = vmatpush1.bf16.msra.mxu0 0
        %845 = vmatprep.subr.bf16.mxu0 0
        %846 = vmatpush1.bf16.msra.mxu0 0
        %847 = vmatprep.subr.bf16.mxu0 0
        %848 = vmatpush1.bf16.msra.mxu0 0
        %849 = vmatprep.subr.bf16.mxu0 0
        %850 = vmatpush1.bf16.msra.mxu0 0
        %851 = vmatprep.subr.bf16.mxu0 0
        %852 = vmatpush1.bf16.msra.mxu0 0
        %853 = vmatprep.subr.bf16.mxu0 0
        %854 = vmatpush1.bf16.msra.mxu0 0
        %855 = vmatprep.subr.bf16.mxu0 0
        %856 = vmatpush1.bf16.msra.mxu0 0
        %857 = vmatprep.subr.bf16.mxu0 0
        %858 = vmatpush1.bf16.msra.mxu0 0
        %859 = vmatprep.subr.bf16.mxu0 0
        %860 = vmatpush1.bf16.msra.mxu0 0
        %861 = vmatprep.subr.bf16.mxu0 0
        %862 = vmatpush1.bf16.msra.mxu0 0
        %863 = vmatprep.subr.bf16.mxu0 0
        %864 = vmatpush1.bf16.msra.mxu0 0
        %865 = vmatprep.subr.bf16.mxu0 0
        %866 = vmatpush1.bf16.msra.mxu0 0
        %867 = vmatprep.subr.bf16.mxu0 0
        %868 = vmatpush1.bf16.msra.mxu0 0
        %869 = vmatprep.subr.bf16.mxu0 0
        %870 = vmatpush1.bf16.msra.mxu0 0
        %871 = vmatprep.mubr.bf16.mxu0 0
        %872 = vmatmul.mubr.bf16.gmra.mrb[0].mxu0 %v714
        %v873 = vpop.f32.mrb[0].mxu0
        %v874 = vadd.f32 0.0, %v873
        %v875 = vpop.f32.mrb[0].mxu0
        %v876 = vpop.f32.mrb[0].mxu0
        %v877 = vpop.f32.mrb[0].mxu0
        %878 = vdwg.mxu0
        %v879 = vadd.f32 %v552, %v751
        %v880 = vadd.f32 %v554, %v753
        %v881 = vadd.f32 %v593, %v792
        %v882 = vadd.f32 %v595, %v794
        %v883 = vadd.f32 %v634, %v833
        %v884 = vadd.f32 %v636, %v835
        %v885 = vadd.f32 %v675, %v874
        %s886 = scalar_lea.vmem [#allocation7], 12
        %v887 = vld [vmem:[%s886] sm:$0xf]
        %888 = vrot.lane.b32.xlu0 %v272, 118
        %v889 = vpop.permute.xlu0 %888
        %890 = vrot.lane.b32.xlu0 %v273, 118
        %v891 = vpop.permute.xlu0 %890
        %892 = vrot.lane.b32.xlu0 %v274, 118
        %v893 = vpop.permute.xlu0 %892
        %894 = vrot.lane.b32.xlu0 %v275, 118
        %v895 = vpop.permute.xlu0 %894
        %896 = vrot.lane.b32.xlu0 %v276, 118
        %v897 = vpop.permute.xlu0 %896
        %898 = vrot.lane.b32.xlu0 %v277, 118
        %v899 = vpop.permute.xlu0 %898
        %900 = vrot.lane.b32.xlu0 %v278, 118
        %v901 = vpop.permute.xlu0 %900
        %902 = vrot.lane.b32.xlu0 %v279, 118
        %v903 = vpop.permute.xlu0 %902
        %vm904 = vcmask 965632
        %v905 = vsel %vm904, %v889, %v891
        %v906 = vsel %vm904, %v891, %v893
        %v907 = vsel %vm904, %v893, %v895
        %v908 = vsel %vm904, %v895, %v897
        %v909 = vsel %vm904, %v897, %v899
        %v910 = vsel %vm904, %v899, %v901
        %v911 = vsel %vm904, %v901, %v903
        %v920 = vsel %vm311, %v887, 0
        %922 = vmatprep.subr.bf16.mxu0 %v906
        %923 = vmatpush1.bf16.msra.mxu0 %v905
        %924 = vmatprep.subr.bf16.mxu0 0
        %925 = vmatpush1.bf16.msra.mxu0 0
        %926 = vmatprep.subr.bf16.mxu0 0
        %927 = vmatpush1.bf16.msra.mxu0 0
        %928 = vmatprep.subr.bf16.mxu0 0
        %929 = vmatpush1.bf16.msra.mxu0 0
        %930 = vmatprep.subr.bf16.mxu0 0
        %931 = vmatpush1.bf16.msra.mxu0 0
        %932 = vmatprep.subr.bf16.mxu0 0
        %933 = vmatpush1.bf16.msra.mxu0 0
        %934 = vmatprep.subr.bf16.mxu0 0
        %935 = vmatpush1.bf16.msra.mxu0 0
        %936 = vmatprep.subr.bf16.mxu0 0
        %937 = vmatpush1.bf16.msra.mxu0 0
        %938 = vmatprep.subr.bf16.mxu0 0
        %939 = vmatpush1.bf16.msra.mxu0 0
        %940 = vmatprep.subr.bf16.mxu0 0
        %941 = vmatpush1.bf16.msra.mxu0 0
        %942 = vmatprep.subr.bf16.mxu0 0
        %943 = vmatpush1.bf16.msra.mxu0 0
        %944 = vmatprep.subr.bf16.mxu0 0
        %945 = vmatpush1.bf16.msra.mxu0 0
        %946 = vmatprep.subr.bf16.mxu0 0
        %947 = vmatpush1.bf16.msra.mxu0 0
        %948 = vmatprep.subr.bf16.mxu0 0
        %949 = vmatpush1.bf16.msra.mxu0 0
        %950 = vmatprep.subr.bf16.mxu0 0
        %951 = vmatpush1.bf16.msra.mxu0 0
        %952 = vmatprep.subr.bf16.mxu0 0
        %953 = vmatpush1.bf16.msra.mxu0 0
        %954 = vmatprep.mubr.bf16.mxu0 0
        %955 = vmatmul.mubr.bf16.gmra.mrb[0].mxu0 %v920
        %v956 = vpop.f32.mrb[0].mxu0
        %v957 = vadd.f32 0.0, %v956
        %v958 = vpop.f32.mrb[0].mxu0
        %v959 = vadd.f32 0.0, %v958
        %v960 = vpop.f32.mrb[0].mxu0
        %v961 = vpop.f32.mrb[0].mxu0
        %962 = vdwg.mxu0
        %963 = vmatprep.subr.bf16.mxu0 %v908
        %964 = vmatpush1.bf16.msra.mxu0 %v907
        %965 = vmatprep.subr.bf16.mxu0 0
        %966 = vmatpush1.bf16.msra.mxu0 0
        %967 = vmatprep.subr.bf16.mxu0 0
        %968 = vmatpush1.bf16.msra.mxu0 0
        %969 = vmatprep.subr.bf16.mxu0 0
        %970 = vmatpush1.bf16.msra.mxu0 0
        %971 = vmatprep.subr.bf16.mxu0 0
        %972 = vmatpush1.bf16.msra.mxu0 0
        %973 = vmatprep.subr.bf16.mxu0 0
        %974 = vmatpush1.bf16.msra.mxu0 0
        %975 = vmatprep.subr.bf16.mxu0 0
        %976 = vmatpush1.bf16.msra.mxu0 0
        %977 = vmatprep.subr.bf16.mxu0 0
        %978 = vmatpush1.bf16.msra.mxu0 0
        %979 = vmatprep.subr.bf16.mxu0 0
        %980 = vmatpush1.bf16.msra.mxu0 0
        %981 = vmatprep.subr.bf16.mxu0 0
        %982 = vmatpush1.bf16.msra.mxu0 0
        %983 = vmatprep.subr.bf16.mxu0 0
        %984 = vmatpush1.bf16.msra.mxu0 0
        %985 = vmatprep.subr.bf16.mxu0 0
        %986 = vmatpush1.bf16.msra.mxu0 0
        %987 = vmatprep.subr.bf16.mxu0 0
        %988 = vmatpush1.bf16.msra.mxu0 0
        %989 = vmatprep.subr.bf16.mxu0 0
        %990 = vmatpush1.bf16.msra.mxu0 0
        %991 = vmatprep.subr.bf16.mxu0 0
        %992 = vmatpush1.bf16.msra.mxu0 0
        %993 = vmatprep.subr.bf16.mxu0 0
        %994 = vmatpush1.bf16.msra.mxu0 0
        %995 = vmatprep.mubr.bf16.mxu0 0
        %996 = vmatmul.mubr.bf16.gmra.mrb[0].mxu0 %v920
        %v997 = vpop.f32.mrb[0].mxu0
        %v998 = vadd.f32 0.0, %v997
        %v999 = vpop.f32.mrb[0].mxu0
        %v1000 = vadd.f32 0.0, %v999
        %v1001 = vpop.f32.mrb[0].mxu0
        %v1002 = vpop.f32.mrb[0].mxu0
        %1003 = vdwg.mxu0
        %1004 = vmatprep.subr.bf16.mxu0 %v910
        %1005 = vmatpush1.bf16.msra.mxu0 %v909
        %1006 = vmatprep.subr.bf16.mxu0 0
        %1007 = vmatpush1.bf16.msra.mxu0 0
        %1008 = vmatprep.subr.bf16.mxu0 0
        %1009 = vmatpush1.bf16.msra.mxu0 0
        %1010 = vmatprep.subr.bf16.mxu0 0
        %1011 = vmatpush1.bf16.msra.mxu0 0
        %1012 = vmatprep.subr.bf16.mxu0 0
        %1013 = vmatpush1.bf16.msra.mxu0 0
        %1014 = vmatprep.subr.bf16.mxu0 0
        %1015 = vmatpush1.bf16.msra.mxu0 0
        %1016 = vmatprep.subr.bf16.mxu0 0
        %1017 = vmatpush1.bf16.msra.mxu0 0
        %1018 = vmatprep.subr.bf16.mxu0 0
        %1019 = vmatpush1.bf16.msra.mxu0 0
        %1020 = vmatprep.subr.bf16.mxu0 0
        %1021 = vmatpush1.bf16.msra.mxu0 0
        %1022 = vmatprep.subr.bf16.mxu0 0
        %1023 = vmatpush1.bf16.msra.mxu0 0
        %1024 = vmatprep.subr.bf16.mxu0 0
        %1025 = vmatpush1.bf16.msra.mxu0 0
        %1026 = vmatprep.subr.bf16.mxu0 0
        %1027 = vmatpush1.bf16.msra.mxu0 0
        %1028 = vmatprep.subr.bf16.mxu0 0
        %1029 = vmatpush1.bf16.msra.mxu0 0
        %1030 = vmatprep.subr.bf16.mxu0 0
        %1031 = vmatpush1.bf16.msra.mxu0 0
        %1032 = vmatprep.subr.bf16.mxu0 0
        %1033 = vmatpush1.bf16.msra.mxu0 0
        %1034 = vmatprep.subr.bf16.mxu0 0
        %1035 = vmatpush1.bf16.msra.mxu0 0
        %1036 = vmatprep.mubr.bf16.mxu0 0
        %1037 = vmatmul.mubr.bf16.gmra.mrb[0].mxu0 %v920
        %v1038 = vpop.f32.mrb[0].mxu0
        %v1039 = vadd.f32 0.0, %v1038
        %v1040 = vpop.f32.mrb[0].mxu0
        %v1041 = vadd.f32 0.0, %v1040
        %v1042 = vpop.f32.mrb[0].mxu0
        %v1043 = vpop.f32.mrb[0].mxu0
        %1044 = vdwg.mxu0
        %1045 = vmatprep.subr.bf16.mxu0 0
        %1046 = vmatpush1.bf16.msra.mxu0 %v911
        %1047 = vmatprep.subr.bf16.mxu0 0
        %1048 = vmatpush1.bf16.msra.mxu0 0
        %1049 = vmatprep.subr.bf16.mxu0 0
        %1050 = vmatpush1.bf16.msra.mxu0 0
        %1051 = vmatprep.subr.bf16.mxu0 0
        %1052 = vmatpush1.bf16.msra.mxu0 0
        %1053 = vmatprep.subr.bf16.mxu0 0
        %1054 = vmatpush1.bf16.msra.mxu0 0
        %1055 = vmatprep.subr.bf16.mxu0 0
        %1056 = vmatpush1.bf16.msra.mxu0 0
        %1057 = vmatprep.subr.bf16.mxu0 0
        %1058 = vmatpush1.bf16.msra.mxu0 0
        %1059 = vmatprep.subr.bf16.mxu0 0
        %1060 = vmatpush1.bf16.msra.mxu0 0
        %1061 = vmatprep.subr.bf16.mxu0 0
        %1062 = vmatpush1.bf16.msra.mxu0 0
        %1063 = vmatprep.subr.bf16.mxu0 0
        %1064 = vmatpush1.bf16.msra.mxu0 0
        %1065 = vmatprep.subr.bf16.mxu0 0
        %1066 = vmatpush1.bf16.msra.mxu0 0
        %1067 = vmatprep.subr.bf16.mxu0 0
        %1068 = vmatpush1.bf16.msra.mxu0 0
        %1069 = vmatprep.subr.bf16.mxu0 0
        %1070 = vmatpush1.bf16.msra.mxu0 0
        %1071 = vmatprep.subr.bf16.mxu0 0
        %1072 = vmatpush1.bf16.msra.mxu0 0
        %1073 = vmatprep.subr.bf16.mxu0 0
        %1074 = vmatpush1.bf16.msra.mxu0 0
        %1075 = vmatprep.subr.bf16.mxu0 0
        %1076 = vmatpush1.bf16.msra.mxu0 0
        %1077 = vmatprep.mubr.bf16.mxu0 0
        %1078 = vmatmul.mubr.bf16.gmra.mrb[0].mxu0 %v920
        %v1079 = vpop.f32.mrb[0].mxu0
        %v1080 = vadd.f32 0.0, %v1079
        %v1081 = vpop.f32.mrb[0].mxu0
        %v1082 = vpop.f32.mrb[0].mxu0
        %v1083 = vpop.f32.mrb[0].mxu0
        %1084 = vdwg.mxu0
        %v1085 = vadd.f32 %v879, %v957
        %v1086 = vadd.f32 %v880, %v959
        %v1087 = vadd.f32 %v881, %v998
        %v1088 = vadd.f32 %v882, %v1000
        %v1089 = vadd.f32 %v883, %v1039
        %v1090 = vadd.f32 %v884, %v1041
        %v1091 = vadd.f32 %v885, %v1080
        %s1092 = scalar_lea.vmem [#allocation7], 16
        %v1093 = vld [vmem:[%s1092] sm:$0xf]
        %1094 = vrot.lane.b32.xlu0 %v272, 117
        %v1095 = vpop.permute.xlu0 %1094
        %1096 = vrot.lane.b32.xlu0 %v273, 117
        %v1097 = vpop.permute.xlu0 %1096
        %1098 = vrot.lane.b32.xlu0 %v274, 117
        %v1099 = vpop.permute.xlu0 %1098
        %1100 = vrot.lane.b32.xlu0 %v275, 117
        %v1101 = vpop.permute.xlu0 %1100
        %1102 = vrot.lane.b32.xlu0 %v276, 117
        %v1103 = vpop.permute.xlu0 %1102
        %1104 = vrot.lane.b32.xlu0 %v277, 117
        %v1105 = vpop.permute.xlu0 %1104
        %1106 = vrot.lane.b32.xlu0 %v278, 117
        %v1107 = vpop.permute.xlu0 %1106
        %1108 = vrot.lane.b32.xlu0 %v279, 117
        %v1109 = vpop.permute.xlu0 %1108
        %vm1110 = vcmask 957440
        %v1111 = vsel %vm1110, %v1095, %v1097
        %v1112 = vsel %vm1110, %v1097, %v1099
        %v1113 = vsel %vm1110, %v1099, %v1101
        %v1114 = vsel %vm1110, %v1101, %v1103
        %v1115 = vsel %vm1110, %v1103, %v1105
        %v1116 = vsel %vm1110, %v1105, %v1107
        %v1117 = vsel %vm1110, %v1107, %v1109
        %v1126 = vsel %vm311, %v1093, 0
        %1128 = vmatprep.subr.bf16.mxu0 %v1112
        %1129 = vmatpush1.bf16.msra.mxu0 %v1111
        %1130 = vmatprep.subr.bf16.mxu0 0
        %1131 = vmatpush1.bf16.msra.mxu0 0
        %1132 = vmatprep.subr.bf16.mxu0 0
        %1133 = vmatpush1.bf16.msra.mxu0 0
        %1134 = vmatprep.subr.bf16.mxu0 0
        %1135 = vmatpush1.bf16.msra.mxu0 0
        %1136 = vmatprep.subr.bf16.mxu0 0
        %1137 = vmatpush1.bf16.msra.mxu0 0
        %1138 = vmatprep.subr.bf16.mxu0 0
        %1139 = vmatpush1.bf16.msra.mxu0 0
        %1140 = vmatprep.subr.bf16.mxu0 0
        %1141 = vmatpush1.bf16.msra.mxu0 0
        %1142 = vmatprep.subr.bf16.mxu0 0
        %1143 = vmatpush1.bf16.msra.mxu0 0
        %1144 = vmatprep.subr.bf16.mxu0 0
        %1145 = vmatpush1.bf16.msra.mxu0 0
        %1146 = vmatprep.subr.bf16.mxu0 0
        %1147 = vmatpush1.bf16.msra.mxu0 0
        %1148 = vmatprep.subr.bf16.mxu0 0
        %1149 = vmatpush1.bf16.msra.mxu0 0
        %1150 = vmatprep.subr.bf16.mxu0 0
        %1151 = vmatpush1.bf16.msra.mxu0 0
        %1152 = vmatprep.subr.bf16.mxu0 0
        %1153 = vmatpush1.bf16.msra.mxu0 0
        %1154 = vmatprep.subr.bf16.mxu0 0
        %1155 = vmatpush1.bf16.msra.mxu0 0
        %1156 = vmatprep.subr.bf16.mxu0 0
        %1157 = vmatpush1.bf16.msra.mxu0 0
        %1158 = vmatprep.subr.bf16.mxu0 0
        %1159 = vmatpush1.bf16.msra.mxu0 0
        %1160 = vmatprep.mubr.bf16.mxu0 0
        %1161 = vmatmul.mubr.bf16.gmra.mrb[0].mxu0 %v1126
        %v1162 = vpop.f32.mrb[0].mxu0
        %v1163 = vadd.f32 0.0, %v1162
        %v1164 = vpop.f32.mrb[0].mxu0
        %v1165 = vadd.f32 0.0, %v1164
        %v1166 = vpop.f32.mrb[0].mxu0
        %v1167 = vpop.f32.mrb[0].mxu0
        %1168 = vdwg.mxu0
        %1169 = vmatprep.subr.bf16.mxu0 %v1114
        %1170 = vmatpush1.bf16.msra.mxu0 %v1113
        %1171 = vmatprep.subr.bf16.mxu0 0
        %1172 = vmatpush1.bf16.msra.mxu0 0
        %1173 = vmatprep.subr.bf16.mxu0 0
        %1174 = vmatpush1.bf16.msra.mxu0 0
        %1175 = vmatprep.subr.bf16.mxu0 0
        %1176 = vmatpush1.bf16.msra.mxu0 0
        %1177 = vmatprep.subr.bf16.mxu0 0
        %1178 = vmatpush1.bf16.msra.mxu0 0
        %1179 = vmatprep.subr.bf16.mxu0 0
        %1180 = vmatpush1.bf16.msra.mxu0 0
        %1181 = vmatprep.subr.bf16.mxu0 0
        %1182 = vmatpush1.bf16.msra.mxu0 0
        %1183 = vmatprep.subr.bf16.mxu0 0
        %1184 = vmatpush1.bf16.msra.mxu0 0
        %1185 = vmatprep.subr.bf16.mxu0 0
        %1186 = vmatpush1.bf16.msra.mxu0 0
        %1187 = vmatprep.subr.bf16.mxu0 0
        %1188 = vmatpush1.bf16.msra.mxu0 0
        %1189 = vmatprep.subr.bf16.mxu0 0
        %1190 = vmatpush1.bf16.msra.mxu0 0
        %1191 = vmatprep.subr.bf16.mxu0 0
        %1192 = vmatpush1.bf16.msra.mxu0 0
        %1193 = vmatprep.subr.bf16.mxu0 0
        %1194 = vmatpush1.bf16.msra.mxu0 0
        %1195 = vmatprep.subr.bf16.mxu0 0
        %1196 = vmatpush1.bf16.msra.mxu0 0
        %1197 = vmatprep.subr.bf16.mxu0 0
        %1198 = vmatpush1.bf16.msra.mxu0 0
        %1199 = vmatprep.subr.bf16.mxu0 0
        %1200 = vmatpush1.bf16.msra.mxu0 0
        %1201 = vmatprep.mubr.bf16.mxu0 0
        %1202 = vmatmul.mubr.bf16.gmra.mrb[0].mxu0 %v1126
        %v1203 = vpop.f32.mrb[0].mxu0
        %v1204 = vadd.f32 0.0, %v1203
        %v1205 = vpop.f32.mrb[0].mxu0
        %v1206 = vadd.f32 0.0, %v1205
        %v1207 = vpop.f32.mrb[0].mxu0
        %v1208 = vpop.f32.mrb[0].mxu0
        %1209 = vdwg.mxu0
        %1210 = vmatprep.subr.bf16.mxu0 %v1116
        %1211 = vmatpush1.bf16.msra.mxu0 %v1115
        %1212 = vmatprep.subr.bf16.mxu0 0
        %1213 = vmatpush1.bf16.msra.mxu0 0
        %1214 = vmatprep.subr.bf16.mxu0 0
        %1215 = vmatpush1.bf16.msra.mxu0 0
        %1216 = vmatprep.subr.bf16.mxu0 0
        %1217 = vmatpush1.bf16.msra.mxu0 0
        %1218 = vmatprep.subr.bf16.mxu0 0
        %1219 = vmatpush1.bf16.msra.mxu0 0
        %1220 = vmatprep.subr.bf16.mxu0 0
        %1221 = vmatpush1.bf16.msra.mxu0 0
        %1222 = vmatprep.subr.bf16.mxu0 0
        %1223 = vmatpush1.bf16.msra.mxu0 0
        %1224 = vmatprep.subr.bf16.mxu0 0
        %1225 = vmatpush1.bf16.msra.mxu0 0
        %1226 = vmatprep.subr.bf16.mxu0 0
        %1227 = vmatpush1.bf16.msra.mxu0 0
        %1228 = vmatprep.subr.bf16.mxu0 0
        %1229 = vmatpush1.bf16.msra.mxu0 0
        %1230 = vmatprep.subr.bf16.mxu0 0
        %1231 = vmatpush1.bf16.msra.mxu0 0
        %1232 = vmatprep.subr.bf16.mxu0 0
        %1233 = vmatpush1.bf16.msra.mxu0 0
        %1234 = vmatprep.subr.bf16.mxu0 0
        %1235 = vmatpush1.bf16.msra.mxu0 0
        %1236 = vmatprep.subr.bf16.mxu0 0
        %1237 = vmatpush1.bf16.msra.mxu0 0
        %1238 = vmatprep.subr.bf16.mxu0 0
        %1239 = vmatpush1.bf16.msra.mxu0 0
        %1240 = vmatprep.subr.bf16.mxu0 0
        %1241 = vmatpush1.bf16.msra.mxu0 0
        %1242 = vmatprep.mubr.bf16.mxu0 0
        %1243 = vmatmul.mubr.bf16.gmra.mrb[0].mxu0 %v1126
        %v1244 = vpop.f32.mrb[0].mxu0
        %v1245 = vadd.f32 0.0, %v1244
        %v1246 = vpop.f32.mrb[0].mxu0
        %v1247 = vadd.f32 0.0, %v1246
        %v1248 = vpop.f32.mrb[0].mxu0
        %v1249 = vpop.f32.mrb[0].mxu0
        %1250 = vdwg.mxu0
        %1251 = vmatprep.subr.bf16.mxu0 0
        %1252 = vmatpush1.bf16.msra.mxu0 %v1117
        %1253 = vmatprep.subr.bf16.mxu0 0
        %1254 = vmatpush1.bf16.msra.mxu0 0
        %1255 = vmatprep.subr.bf16.mxu0 0
        %1256 = vmatpush1.bf16.msra.mxu0 0
        %1257 = vmatprep.subr.bf16.mxu0 0
        %1258 = vmatpush1.bf16.msra.mxu0 0
        %1259 = vmatprep.subr.bf16.mxu0 0
        %1260 = vmatpush1.bf16.msra.mxu0 0
        %1261 = vmatprep.subr.bf16.mxu0 0
        %1262 = vmatpush1.bf16.msra.mxu0 0
        %1263 = vmatprep.subr.bf16.mxu0 0
        %1264 = vmatpush1.bf16.msra.mxu0 0
        %1265 = vmatprep.subr.bf16.mxu0 0
        %1266 = vmatpush1.bf16.msra.mxu0 0
        %1267 = vmatprep.subr.bf16.mxu0 0
        %1268 = vmatpush1.bf16.msra.mxu0 0
        %1269 = vmatprep.subr.bf16.mxu0 0
        %1270 = vmatpush1.bf16.msra.mxu0 0
        %1271 = vmatprep.subr.bf16.mxu0 0
        %1272 = vmatpush1.bf16.msra.mxu0 0
        %1273 = vmatprep.subr.bf16.mxu0 0
        %1274 = vmatpush1.bf16.msra.mxu0 0
        %1275 = vmatprep.subr.bf16.mxu0 0
        %1276 = vmatpush1.bf16.msra.mxu0 0
        %1277 = vmatprep.subr.bf16.mxu0 0
        %1278 = vmatpush1.bf16.msra.mxu0 0
        %1279 = vmatprep.subr.bf16.mxu0 0
        %1280 = vmatpush1.bf16.msra.mxu0 0
        %1281 = vmatprep.subr.bf16.mxu0 0
        %1282 = vmatpush1.bf16.msra.mxu0 0
        %1283 = vmatprep.mubr.bf16.mxu0 0
        %1284 = vmatmul.mubr.bf16.gmra.mrb[0].mxu0 %v1126
        %v1285 = vpop.f32.mrb[0].mxu0
        %v1286 = vadd.f32 0.0, %v1285
        %v1287 = vpop.f32.mrb[0].mxu0
        %v1288 = vpop.f32.mrb[0].mxu0
        %v1289 = vpop.f32.mrb[0].mxu0
        %1290 = vdwg.mxu0
        %v1291 = vadd.f32 %v1085, %v1163
        %v1292 = vadd.f32 %v1086, %v1165
        %v1293 = vadd.f32 %v1087, %v1204
        %v1294 = vadd.f32 %v1088, %v1206
        %v1295 = vadd.f32 %v1089, %v1245
        %v1296 = vadd.f32 %v1090, %v1247
        %v1297 = vadd.f32 %v1091, %v1286
        %s1298 = scalar_lea.vmem [#allocation7], 20
        %v1299 = vld [vmem:[%s1298] sm:$0xf]
        %1300 = vrot.lane.b32.xlu0 %v272, 116
        %v1301 = vpop.permute.xlu0 %1300
        %1302 = vrot.lane.b32.xlu0 %v273, 116
        %v1303 = vpop.permute.xlu0 %1302
        %1304 = vrot.lane.b32.xlu0 %v274, 116
        %v1305 = vpop.permute.xlu0 %1304
        %1306 = vrot.lane.b32.xlu0 %v275, 116
        %v1307 = vpop.permute.xlu0 %1306
        %1308 = vrot.lane.b32.xlu0 %v276, 116
        %v1309 = vpop.permute.xlu0 %1308
        %1310 = vrot.lane.b32.xlu0 %v277, 116
        %v1311 = vpop.permute.xlu0 %1310
        %1312 = vrot.lane.b32.xlu0 %v278, 116
        %v1313 = vpop.permute.xlu0 %1312
        %1314 = vrot.lane.b32.xlu0 %v279, 116
        %v1315 = vpop.permute.xlu0 %1314
        %vm1316 = vcmask 949248
        %v1317 = vsel %vm1316, %v1301, %v1303
        %v1318 = vsel %vm1316, %v1303, %v1305
        %v1319 = vsel %vm1316, %v1305, %v1307
        %v1320 = vsel %vm1316, %v1307, %v1309
        %v1321 = vsel %vm1316, %v1309, %v1311
        %v1322 = vsel %vm1316, %v1311, %v1313
        %v1323 = vsel %vm1316, %v1313, %v1315
        %v1332 = vsel %vm311, %v1299, 0
        %1334 = vmatprep.subr.bf16.mxu0 %v1318
        %1335 = vmatpush1.bf16.msra.mxu0 %v1317
        %1336 = vmatprep.subr.bf16.mxu0 0
        %1337 = vmatpush1.bf16.msra.mxu0 0
        %1338 = vmatprep.subr.bf16.mxu0 0
        %1339 = vmatpush1.bf16.msra.mxu0 0
        %1340 = vmatprep.subr.bf16.mxu0 0
        %1341 = vmatpush1.bf16.msra.mxu0 0
        %1342 = vmatprep.subr.bf16.mxu0 0
        %1343 = vmatpush1.bf16.msra.mxu0 0
        %1344 = vmatprep.subr.bf16.mxu0 0
        %1345 = vmatpush1.bf16.msra.mxu0 0
        %1346 = vmatprep.subr.bf16.mxu0 0
        %1347 = vmatpush1.bf16.msra.mxu0 0
        %1348 = vmatprep.subr.bf16.mxu0 0
        %1349 = vmatpush1.bf16.msra.mxu0 0
        %1350 = vmatprep.subr.bf16.mxu0 0
        %1351 = vmatpush1.bf16.msra.mxu0 0
        %1352 = vmatprep.subr.bf16.mxu0 0
        %1353 = vmatpush1.bf16.msra.mxu0 0
        %1354 = vmatprep.subr.bf16.mxu0 0
        %1355 = vmatpush1.bf16.msra.mxu0 0
        %1356 = vmatprep.subr.bf16.mxu0 0
        %1357 = vmatpush1.bf16.msra.mxu0 0
        %1358 = vmatprep.subr.bf16.mxu0 0
        %1359 = vmatpush1.bf16.msra.mxu0 0
        %1360 = vmatprep.subr.bf16.mxu0 0
        %1361 = vmatpush1.bf16.msra.mxu0 0
        %1362 = vmatprep.subr.bf16.mxu0 0
        %1363 = vmatpush1.bf16.msra.mxu0 0
        %1364 = vmatprep.subr.bf16.mxu0 0
        %1365 = vmatpush1.bf16.msra.mxu0 0
        %1366 = vmatprep.mubr.bf16.mxu0 0
        %1367 = vmatmul.mubr.bf16.gmra.mrb[0].mxu0 %v1332
        %v1368 = vpop.f32.mrb[0].mxu0
        %v1369 = vadd.f32 0.0, %v1368
        %v1370 = vpop.f32.mrb[0].mxu0
        %v1371 = vadd.f32 0.0, %v1370
        %v1372 = vpop.f32.mrb[0].mxu0
        %v1373 = vpop.f32.mrb[0].mxu0
        %1374 = vdwg.mxu0
        %1375 = vmatprep.subr.bf16.mxu0 %v1320
        %1376 = vmatpush1.bf16.msra.mxu0 %v1319
        %1377 = vmatprep.subr.bf16.mxu0 0
        %1378 = vmatpush1.bf16.msra.mxu0 0
        %1379 = vmatprep.subr.bf16.mxu0 0
        %1380 = vmatpush1.bf16.msra.mxu0 0
        %1381 = vmatprep.subr.bf16.mxu0 0
        %1382 = vmatpush1.bf16.msra.mxu0 0
        %1383 = vmatprep.subr.bf16.mxu0 0
        %1384 = vmatpush1.bf16.msra.mxu0 0
        %1385 = vmatprep.subr.bf16.mxu0 0
        %1386 = vmatpush1.bf16.msra.mxu0 0
        %1387 = vmatprep.subr.bf16.mxu0 0
        %1388 = vmatpush1.bf16.msra.mxu0 0
        %1389 = vmatprep.subr.bf16.mxu0 0
        %1390 = vmatpush1.bf16.msra.mxu0 0
        %1391 = vmatprep.subr.bf16.mxu0 0
        %1392 = vmatpush1.bf16.msra.mxu0 0
        %1393 = vmatprep.subr.bf16.mxu0 0
        %1394 = vmatpush1.bf16.msra.mxu0 0
        %1395 = vmatprep.subr.bf16.mxu0 0
        %1396 = vmatpush1.bf16.msra.mxu0 0
        %1397 = vmatprep.subr.bf16.mxu0 0
        %1398 = vmatpush1.bf16.msra.mxu0 0
        %1399 = vmatprep.subr.bf16.mxu0 0
        %1400 = vmatpush1.bf16.msra.mxu0 0
        %1401 = vmatprep.subr.bf16.mxu0 0
        %1402 = vmatpush1.bf16.msra.mxu0 0
        %1403 = vmatprep.subr.bf16.mxu0 0
        %1404 = vmatpush1.bf16.msra.mxu0 0
        %1405 = vmatprep.subr.bf16.mxu0 0
        %1406 = vmatpush1.bf16.msra.mxu0 0
        %1407 = vmatprep.mubr.bf16.mxu0 0
        %1408 = vmatmul.mubr.bf16.gmra.mrb[0].mxu0 %v1332
        %v1409 = vpop.f32.mrb[0].mxu0
        %v1410 = vadd.f32 0.0, %v1409
        %v1411 = vpop.f32.mrb[0].mxu0
        %v1412 = vadd.f32 0.0, %v1411
        %v1413 = vpop.f32.mrb[0].mxu0
        %v1414 = vpop.f32.mrb[0].mxu0
        %1415 = vdwg.mxu0
        %1416 = vmatprep.subr.bf16.mxu0 %v1322
        %1417 = vmatpush1.bf16.msra.mxu0 %v1321
        %1418 = vmatprep.subr.bf16.mxu0 0
        %1419 = vmatpush1.bf16.msra.mxu0 0
        %1420 = vmatprep.subr.bf16.mxu0 0
        %1421 = vmatpush1.bf16.msra.mxu0 0
        %1422 = vmatprep.subr.bf16.mxu0 0
        %1423 = vmatpush1.bf16.msra.mxu0 0
        %1424 = vmatprep.subr.bf16.mxu0 0
        %1425 = vmatpush1.bf16.msra.mxu0 0
        %1426 = vmatprep.subr.bf16.mxu0 0
        %1427 = vmatpush1.bf16.msra.mxu0 0
        %1428 = vmatprep.subr.bf16.mxu0 0
        %1429 = vmatpush1.bf16.msra.mxu0 0
        %1430 = vmatprep.subr.bf16.mxu0 0
        %1431 = vmatpush1.bf16.msra.mxu0 0
        %1432 = vmatprep.subr.bf16.mxu0 0
        %1433 = vmatpush1.bf16.msra.mxu0 0
        %1434 = vmatprep.subr.bf16.mxu0 0
        %1435 = vmatpush1.bf16.msra.mxu0 0
        %1436 = vmatprep.subr.bf16.mxu0 0
        %1437 = vmatpush1.bf16.msra.mxu0 0
        %1438 = vmatprep.subr.bf16.mxu0 0
        %1439 = vmatpush1.bf16.msra.mxu0 0
        %1440 = vmatprep.subr.bf16.mxu0 0
        %1441 = vmatpush1.bf16.msra.mxu0 0
        %1442 = vmatprep.subr.bf16.mxu0 0
        %1443 = vmatpush1.bf16.msra.mxu0 0
        %1444 = vmatprep.subr.bf16.mxu0 0
        %1445 = vmatpush1.bf16.msra.mxu0 0
        %1446 = vmatprep.subr.bf16.mxu0 0
        %1447 = vmatpush1.bf16.msra.mxu0 0
        %1448 = vmatprep.mubr.bf16.mxu0 0
        %1449 = vmatmul.mubr.bf16.gmra.mrb[0].mxu0 %v1332
        %v1450 = vpop.f32.mrb[0].mxu0
        %v1451 = vadd.f32 0.0, %v1450
        %v1452 = vpop.f32.mrb[0].mxu0
        %v1453 = vadd.f32 0.0, %v1452
        %v1454 = vpop.f32.mrb[0].mxu0
        %v1455 = vpop.f32.mrb[0].mxu0
        %1456 = vdwg.mxu0
        %1457 = vmatprep.subr.bf16.mxu0 0
        %1458 = vmatpush1.bf16.msra.mxu0 %v1323
        %1459 = vmatprep.subr.bf16.mxu0 0
        %1460 = vmatpush1.bf16.msra.mxu0 0
        %1461 = vmatprep.subr.bf16.mxu0 0
        %1462 = vmatpush1.bf16.msra.mxu0 0
        %1463 = vmatprep.subr.bf16.mxu0 0
        %1464 = vmatpush1.bf16.msra.mxu0 0
        %1465 = vmatprep.subr.bf16.mxu0 0
        %1466 = vmatpush1.bf16.msra.mxu0 0
        %1467 = vmatprep.subr.bf16.mxu0 0
        %1468 = vmatpush1.bf16.msra.mxu0 0
        %1469 = vmatprep.subr.bf16.mxu0 0
        %1470 = vmatpush1.bf16.msra.mxu0 0
        %1471 = vmatprep.subr.bf16.mxu0 0
        %1472 = vmatpush1.bf16.msra.mxu0 0
        %1473 = vmatprep.subr.bf16.mxu0 0
        %1474 = vmatpush1.bf16.msra.mxu0 0
        %1475 = vmatprep.subr.bf16.mxu0 0
        %1476 = vmatpush1.bf16.msra.mxu0 0
        %1477 = vmatprep.subr.bf16.mxu0 0
        %1478 = vmatpush1.bf16.msra.mxu0 0
        %1479 = vmatprep.subr.bf16.mxu0 0
        %1480 = vmatpush1.bf16.msra.mxu0 0
        %1481 = vmatprep.subr.bf16.mxu0 0
        %1482 = vmatpush1.bf16.msra.mxu0 0
        %1483 = vmatprep.subr.bf16.mxu0 0
        %1484 = vmatpush1.bf16.msra.mxu0 0
        %1485 = vmatprep.subr.bf16.mxu0 0
        %1486 = vmatpush1.bf16.msra.mxu0 0
        %1487 = vmatprep.subr.bf16.mxu0 0
        %1488 = vmatpush1.bf16.msra.mxu0 0
        %1489 = vmatprep.mubr.bf16.mxu0 0
        %1490 = vmatmul.mubr.bf16.gmra.mrb[0].mxu0 %v1332
        %v1491 = vpop.f32.mrb[0].mxu0
        %v1492 = vadd.f32 0.0, %v1491
        %v1493 = vpop.f32.mrb[0].mxu0
        %v1494 = vpop.f32.mrb[0].mxu0
        %v1495 = vpop.f32.mrb[0].mxu0
        %1496 = vdwg.mxu0
        %v1497 = vadd.f32 %v1291, %v1369
        %v1498 = vadd.f32 %v1292, %v1371
        %v1499 = vadd.f32 %v1293, %v1410
        %v1500 = vadd.f32 %v1294, %v1412
        %v1501 = vadd.f32 %v1295, %v1451
        %v1502 = vadd.f32 %v1296, %v1453
        %v1503 = vadd.f32 %v1297, %v1492
        %s1504 = scalar_lea.vmem [#allocation7], 24
        %v1505 = vld [vmem:[%s1504] sm:$0xf]
        %1506 = vrot.lane.b32.xlu0 %v272, 108
        %v1507 = vpop.permute.xlu0 %1506
        %1508 = vrot.lane.b32.xlu0 %v273, 108
        %v1509 = vpop.permute.xlu0 %1508
        %1510 = vrot.lane.b32.xlu0 %v274, 108
        %v1511 = vpop.permute.xlu0 %1510
        %1512 = vrot.lane.b32.xlu0 %v275, 108
        %v1513 = vpop.permute.xlu0 %1512
        %1514 = vrot.lane.b32.xlu0 %v276, 108
        %v1515 = vpop.permute.xlu0 %1514
        %1516 = vrot.lane.b32.xlu0 %v277, 108
        %v1517 = vpop.permute.xlu0 %1516
        %1518 = vrot.lane.b32.xlu0 %v278, 108
        %v1519 = vpop.permute.xlu0 %1518
        %1520 = vrot.lane.b32.xlu0 %v279, 108
        %v1521 = vpop.permute.xlu0 %1520
        %vm1522 = vcmask 883712
        %v1523 = vsel %vm1522, %v1507, %v1509
        %v1524 = vsel %vm1522, %v1509, %v1511
        %v1525 = vsel %vm1522, %v1511, %v1513
        %v1526 = vsel %vm1522, %v1513, %v1515
        %v1527 = vsel %vm1522, %v1515, %v1517
        %v1528 = vsel %vm1522, %v1517, %v1519
        %v1529 = vsel %vm1522, %v1519, %v1521
        %v1538 = vsel %vm311, %v1505, 0
        %1540 = vmatprep.subr.bf16.mxu0 %v1524
        %1541 = vmatpush1.bf16.msra.mxu0 %v1523
        %1542 = vmatprep.subr.bf16.mxu0 0
        %1543 = vmatpush1.bf16.msra.mxu0 0
        %1544 = vmatprep.subr.bf16.mxu0 0
        %1545 = vmatpush1.bf16.msra.mxu0 0
        %1546 = vmatprep.subr.bf16.mxu0 0
        %1547 = vmatpush1.bf16.msra.mxu0 0
        %1548 = vmatprep.subr.bf16.mxu0 0
        %1549 = vmatpush1.bf16.msra.mxu0 0
        %1550 = vmatprep.subr.bf16.mxu0 0
        %1551 = vmatpush1.bf16.msra.mxu0 0
        %1552 = vmatprep.subr.bf16.mxu0 0
        %1553 = vmatpush1.bf16.msra.mxu0 0
        %1554 = vmatprep.subr.bf16.mxu0 0
        %1555 = vmatpush1.bf16.msra.mxu0 0
        %1556 = vmatprep.subr.bf16.mxu0 0
        %1557 = vmatpush1.bf16.msra.mxu0 0
        %1558 = vmatprep.subr.bf16.mxu0 0
        %1559 = vmatpush1.bf16.msra.mxu0 0
        %1560 = vmatprep.subr.bf16.mxu0 0
        %1561 = vmatpush1.bf16.msra.mxu0 0
        %1562 = vmatprep.subr.bf16.mxu0 0
        %1563 = vmatpush1.bf16.msra.mxu0 0
        %1564 = vmatprep.subr.bf16.mxu0 0
        %1565 = vmatpush1.bf16.msra.mxu0 0
        %1566 = vmatprep.subr.bf16.mxu0 0
        %1567 = vmatpush1.bf16.msra.mxu0 0
        %1568 = vmatprep.subr.bf16.mxu0 0
        %1569 = vmatpush1.bf16.msra.mxu0 0
        %1570 = vmatprep.subr.bf16.mxu0 0
        %1571 = vmatpush1.bf16.msra.mxu0 0
        %1572 = vmatprep.mubr.bf16.mxu0 0
        %1573 = vmatmul.mubr.bf16.gmra.mrb[0].mxu0 %v1538
        %v1574 = vpop.f32.mrb[0].mxu0
        %v1575 = vadd.f32 0.0, %v1574
        %v1576 = vpop.f32.mrb[0].mxu0
        %v1577 = vadd.f32 0.0, %v1576
        %v1578 = vpop.f32.mrb[0].mxu0
        %v1579 = vpop.f32.mrb[0].mxu0
        %1580 = vdwg.mxu0
        %1581 = vmatprep.subr.bf16.mxu0 %v1526
        %1582 = vmatpush1.bf16.msra.mxu0 %v1525
        %1583 = vmatprep.subr.bf16.mxu0 0
        %1584 = vmatpush1.bf16.msra.mxu0 0
        %1585 = vmatprep.subr.bf16.mxu0 0
        %1586 = vmatpush1.bf16.msra.mxu0 0
        %1587 = vmatprep.subr.bf16.mxu0 0
        %1588 = vmatpush1.bf16.msra.mxu0 0
        %1589 = vmatprep.subr.bf16.mxu0 0
        %1590 = vmatpush1.bf16.msra.mxu0 0
        %1591 = vmatprep.subr.bf16.mxu0 0
        %1592 = vmatpush1.bf16.msra.mxu0 0
        %1593 = vmatprep.subr.bf16.mxu0 0
        %1594 = vmatpush1.bf16.msra.mxu0 0
        %1595 = vmatprep.subr.bf16.mxu0 0
        %1596 = vmatpush1.bf16.msra.mxu0 0
        %1597 = vmatprep.subr.bf16.mxu0 0
        %1598 = vmatpush1.bf16.msra.mxu0 0
        %1599 = vmatprep.subr.bf16.mxu0 0
        %1600 = vmatpush1.bf16.msra.mxu0 0
        %1601 = vmatprep.subr.bf16.mxu0 0
        %1602 = vmatpush1.bf16.msra.mxu0 0
        %1603 = vmatprep.subr.bf16.mxu0 0
        %1604 = vmatpush1.bf16.msra.mxu0 0
        %1605 = vmatprep.subr.bf16.mxu0 0
        %1606 = vmatpush1.bf16.msra.mxu0 0
        %1607 = vmatprep.subr.bf16.mxu0 0
        %1608 = vmatpush1.bf16.msra.mxu0 0
        %1609 = vmatprep.subr.bf16.mxu0 0
        %1610 = vmatpush1.bf16.msra.mxu0 0
        %1611 = vmatprep.subr.bf16.mxu0 0
        %1612 = vmatpush1.bf16.msra.mxu0 0
        %1613 = vmatprep.mubr.bf16.mxu0 0
        %1614 = vmatmul.mubr.bf16.gmra.mrb[0].mxu0 %v1538
        %v1615 = vpop.f32.mrb[0].mxu0
        %v1616 = vadd.f32 0.0, %v1615
        %v1617 = vpop.f32.mrb[0].mxu0
        %v1618 = vadd.f32 0.0, %v1617
        %v1619 = vpop.f32.mrb[0].mxu0
        %v1620 = vpop.f32.mrb[0].mxu0
        %1621 = vdwg.mxu0
        %1622 = vmatprep.subr.bf16.mxu0 %v1528
        %1623 = vmatpush1.bf16.msra.mxu0 %v1527
        %1624 = vmatprep.subr.bf16.mxu0 0
        %1625 = vmatpush1.bf16.msra.mxu0 0
        %1626 = vmatprep.subr.bf16.mxu0 0
        %1627 = vmatpush1.bf16.msra.mxu0 0
        %1628 = vmatprep.subr.bf16.mxu0 0
        %1629 = vmatpush1.bf16.msra.mxu0 0
        %1630 = vmatprep.subr.bf16.mxu0 0
        %1631 = vmatpush1.bf16.msra.mxu0 0
        %1632 = vmatprep.subr.bf16.mxu0 0
        %1633 = vmatpush1.bf16.msra.mxu0 0
        %1634 = vmatprep.subr.bf16.mxu0 0
        %1635 = vmatpush1.bf16.msra.mxu0 0
        %1636 = vmatprep.subr.bf16.mxu0 0
        %1637 = vmatpush1.bf16.msra.mxu0 0
        %1638 = vmatprep.subr.bf16.mxu0 0
        %1639 = vmatpush1.bf16.msra.mxu0 0
        %1640 = vmatprep.subr.bf16.mxu0 0
        %1641 = vmatpush1.bf16.msra.mxu0 0
        %1642 = vmatprep.subr.bf16.mxu0 0
        %1643 = vmatpush1.bf16.msra.mxu0 0
        %1644 = vmatprep.subr.bf16.mxu0 0
        %1645 = vmatpush1.bf16.msra.mxu0 0
        %1646 = vmatprep.subr.bf16.mxu0 0
        %1647 = vmatpush1.bf16.msra.mxu0 0
        %1648 = vmatprep.subr.bf16.mxu0 0
        %1649 = vmatpush1.bf16.msra.mxu0 0
        %1650 = vmatprep.subr.bf16.mxu0 0
        %1651 = vmatpush1.bf16.msra.mxu0 0
        %1652 = vmatprep.subr.bf16.mxu0 0
        %1653 = vmatpush1.bf16.msra.mxu0 0
        %1654 = vmatprep.mubr.bf16.mxu0 0
        %1655 = vmatmul.mubr.bf16.gmra.mrb[0].mxu0 %v1538
        %v1656 = vpop.f32.mrb[0].mxu0
        %v1657 = vadd.f32 0.0, %v1656
        %v1658 = vpop.f32.mrb[0].mxu0
        %v1659 = vadd.f32 0.0, %v1658
        %v1660 = vpop.f32.mrb[0].mxu0
        %v1661 = vpop.f32.mrb[0].mxu0
        %1662 = vdwg.mxu0
        %1663 = vmatprep.subr.bf16.mxu0 0
        %1664 = vmatpush1.bf16.msra.mxu0 %v1529
        %1665 = vmatprep.subr.bf16.mxu0 0
        %1666 = vmatpush1.bf16.msra.mxu0 0
        %1667 = vmatprep.subr.bf16.mxu0 0
        %1668 = vmatpush1.bf16.msra.mxu0 0
        %1669 = vmatprep.subr.bf16.mxu0 0
        %1670 = vmatpush1.bf16.msra.mxu0 0
        %1671 = vmatprep.subr.bf16.mxu0 0
        %1672 = vmatpush1.bf16.msra.mxu0 0
        %1673 = vmatprep.subr.bf16.mxu0 0
        %1674 = vmatpush1.bf16.msra.mxu0 0
        %1675 = vmatprep.subr.bf16.mxu0 0
        %1676 = vmatpush1.bf16.msra.mxu0 0
        %1677 = vmatprep.subr.bf16.mxu0 0
        %1678 = vmatpush1.bf16.msra.mxu0 0
        %1679 = vmatprep.subr.bf16.mxu0 0
        %1680 = vmatpush1.bf16.msra.mxu0 0
        %1681 = vmatprep.subr.bf16.mxu0 0
        %1682 = vmatpush1.bf16.msra.mxu0 0
        %1683 = vmatprep.subr.bf16.mxu0 0
        %1684 = vmatpush1.bf16.msra.mxu0 0
        %1685 = vmatprep.subr.bf16.mxu0 0
        %1686 = vmatpush1.bf16.msra.mxu0 0
        %1687 = vmatprep.subr.bf16.mxu0 0
        %1688 = vmatpush1.bf16.msra.mxu0 0
        %1689 = vmatprep.subr.bf16.mxu0 0
        %1690 = vmatpush1.bf16.msra.mxu0 0
        %1691 = vmatprep.subr.bf16.mxu0 0
        %1692 = vmatpush1.bf16.msra.mxu0 0
        %1693 = vmatprep.subr.bf16.mxu0 0
        %1694 = vmatpush1.bf16.msra.mxu0 0
        %1695 = vmatprep.mubr.bf16.mxu0 0
        %1696 = vmatmul.mubr.bf16.gmra.mrb[0].mxu0 %v1538
        %v1697 = vpop.f32.mrb[0].mxu0
        %v1698 = vadd.f32 0.0, %v1697
        %v1699 = vpop.f32.mrb[0].mxu0
        %v1700 = vpop.f32.mrb[0].mxu0
        %v1701 = vpop.f32.mrb[0].mxu0
        %1702 = vdwg.mxu0
        %v1703 = vadd.f32 %v1497, %v1575
        %v1704 = vadd.f32 %v1498, %v1577
        %v1705 = vadd.f32 %v1499, %v1616
        %v1706 = vadd.f32 %v1500, %v1618
        %v1707 = vadd.f32 %v1501, %v1657
        %v1708 = vadd.f32 %v1502, %v1659
        %v1709 = vadd.f32 %v1503, %v1698
        %s1710 = scalar_lea.vmem [#allocation7], 28
        %v1711 = vld [vmem:[%s1710] sm:$0xf]
        %1712 = vrot.lane.b32.xlu0 %v272, 107
        %v1713 = vpop.permute.xlu0 %1712
        %1714 = vrot.lane.b32.xlu0 %v273, 107
        %v1715 = vpop.permute.xlu0 %1714
        %1716 = vrot.lane.b32.xlu0 %v274, 107
        %v1717 = vpop.permute.xlu0 %1716
        %1718 = vrot.lane.b32.xlu0 %v275, 107
        %v1719 = vpop.permute.xlu0 %1718
        %1720 = vrot.lane.b32.xlu0 %v276, 107
        %v1721 = vpop.permute.xlu0 %1720
        %1722 = vrot.lane.b32.xlu0 %v277, 107
        %v1723 = vpop.permute.xlu0 %1722
        %1724 = vrot.lane.b32.xlu0 %v278, 107
        %v1725 = vpop.permute.xlu0 %1724
        %1726 = vrot.lane.b32.xlu0 %v279, 107
        %v1727 = vpop.permute.xlu0 %1726
        %vm1728 = vcmask 875520
        %v1729 = vsel %vm1728, %v1713, %v1715
        %v1730 = vsel %vm1728, %v1715, %v1717
        %v1731 = vsel %vm1728, %v1717, %v1719
        %v1732 = vsel %vm1728, %v1719, %v1721
        %v1733 = vsel %vm1728, %v1721, %v1723
        %v1734 = vsel %vm1728, %v1723, %v1725
        %v1735 = vsel %vm1728, %v1725, %v1727
        %v1744 = vsel %vm311, %v1711, 0
        %1746 = vmatprep.subr.bf16.mxu0 %v1730
        %1747 = vmatpush1.bf16.msra.mxu0 %v1729
        %1748 = vmatprep.subr.bf16.mxu0 0
        %1749 = vmatpush1.bf16.msra.mxu0 0
        %1750 = vmatprep.subr.bf16.mxu0 0
        %1751 = vmatpush1.bf16.msra.mxu0 0
        %1752 = vmatprep.subr.bf16.mxu0 0
        %1753 = vmatpush1.bf16.msra.mxu0 0
        %1754 = vmatprep.subr.bf16.mxu0 0
        %1755 = vmatpush1.bf16.msra.mxu0 0
        %1756 = vmatprep.subr.bf16.mxu0 0
        %1757 = vmatpush1.bf16.msra.mxu0 0
        %1758 = vmatprep.subr.bf16.mxu0 0
        %1759 = vmatpush1.bf16.msra.mxu0 0
        %1760 = vmatprep.subr.bf16.mxu0 0
        %1761 = vmatpush1.bf16.msra.mxu0 0
        %1762 = vmatprep.subr.bf16.mxu0 0
        %1763 = vmatpush1.bf16.msra.mxu0 0
        %1764 = vmatprep.subr.bf16.mxu0 0
        %1765 = vmatpush1.bf16.msra.mxu0 0
        %1766 = vmatprep.subr.bf16.mxu0 0
        %1767 = vmatpush1.bf16.msra.mxu0 0
        %1768 = vmatprep.subr.bf16.mxu0 0
        %1769 = vmatpush1.bf16.msra.mxu0 0
        %1770 = vmatprep.subr.bf16.mxu0 0
        %1771 = vmatpush1.bf16.msra.mxu0 0
        %1772 = vmatprep.subr.bf16.mxu0 0
        %1773 = vmatpush1.bf16.msra.mxu0 0
        %1774 = vmatprep.subr.bf16.mxu0 0
        %1775 = vmatpush1.bf16.msra.mxu0 0
        %1776 = vmatprep.subr.bf16.mxu0 0
        %1777 = vmatpush1.bf16.msra.mxu0 0
        %1778 = vmatprep.mubr.bf16.mxu0 0
        %1779 = vmatmul.mubr.bf16.gmra.mrb[0].mxu0 %v1744
        %v1780 = vpop.f32.mrb[0].mxu0
        %v1781 = vadd.f32 0.0, %v1780
        %v1782 = vpop.f32.mrb[0].mxu0
        %v1783 = vadd.f32 0.0, %v1782
        %v1784 = vpop.f32.mrb[0].mxu0
        %v1785 = vpop.f32.mrb[0].mxu0
        %1786 = vdwg.mxu0
        %1787 = vmatprep.subr.bf16.mxu0 %v1732
        %1788 = vmatpush1.bf16.msra.mxu0 %v1731
        %1789 = vmatprep.subr.bf16.mxu0 0
        %1790 = vmatpush1.bf16.msra.mxu0 0
        %1791 = vmatprep.subr.bf16.mxu0 0
        %1792 = vmatpush1.bf16.msra.mxu0 0
        %1793 = vmatprep.subr.bf16.mxu0 0
        %1794 = vmatpush1.bf16.msra.mxu0 0
        %1795 = vmatprep.subr.bf16.mxu0 0
        %1796 = vmatpush1.bf16.msra.mxu0 0
        %1797 = vmatprep.subr.bf16.mxu0 0
        %1798 = vmatpush1.bf16.msra.mxu0 0
        %1799 = vmatprep.subr.bf16.mxu0 0
        %1800 = vmatpush1.bf16.msra.mxu0 0
        %1801 = vmatprep.subr.bf16.mxu0 0
        %1802 = vmatpush1.bf16.msra.mxu0 0
        %1803 = vmatprep.subr.bf16.mxu0 0
        %1804 = vmatpush1.bf16.msra.mxu0 0
        %1805 = vmatprep.subr.bf16.mxu0 0
        %1806 = vmatpush1.bf16.msra.mxu0 0
        %1807 = vmatprep.subr.bf16.mxu0 0
        %1808 = vmatpush1.bf16.msra.mxu0 0
        %1809 = vmatprep.subr.bf16.mxu0 0
        %1810 = vmatpush1.bf16.msra.mxu0 0
        %1811 = vmatprep.subr.bf16.mxu0 0
        %1812 = vmatpush1.bf16.msra.mxu0 0
        %1813 = vmatprep.subr.bf16.mxu0 0
        %1814 = vmatpush1.bf16.msra.mxu0 0
        %1815 = vmatprep.subr.bf16.mxu0 0
        %1816 = vmatpush1.bf16.msra.mxu0 0
        %1817 = vmatprep.subr.bf16.mxu0 0
        %1818 = vmatpush1.bf16.msra.mxu0 0
        %1819 = vmatprep.mubr.bf16.mxu0 0
        %1820 = vmatmul.mubr.bf16.gmra.mrb[0].mxu0 %v1744
        %v1821 = vpop.f32.mrb[0].mxu0
        %v1822 = vadd.f32 0.0, %v1821
        %v1823 = vpop.f32.mrb[0].mxu0
        %v1824 = vadd.f32 0.0, %v1823
        %v1825 = vpop.f32.mrb[0].mxu0
        %v1826 = vpop.f32.mrb[0].mxu0
        %1827 = vdwg.mxu0
        %1828 = vmatprep.subr.bf16.mxu0 %v1734
        %1829 = vmatpush1.bf16.msra.mxu0 %v1733
        %1830 = vmatprep.subr.bf16.mxu0 0
        %1831 = vmatpush1.bf16.msra.mxu0 0
        %1832 = vmatprep.subr.bf16.mxu0 0
        %1833 = vmatpush1.bf16.msra.mxu0 0
        %1834 = vmatprep.subr.bf16.mxu0 0
        %1835 = vmatpush1.bf16.msra.mxu0 0
        %1836 = vmatprep.subr.bf16.mxu0 0
        %1837 = vmatpush1.bf16.msra.mxu0 0
        %1838 = vmatprep.subr.bf16.mxu0 0
        %1839 = vmatpush1.bf16.msra.mxu0 0
        %1840 = vmatprep.subr.bf16.mxu0 0
        %1841 = vmatpush1.bf16.msra.mxu0 0
        %1842 = vmatprep.subr.bf16.mxu0 0
        %1843 = vmatpush1.bf16.msra.mxu0 0
        %1844 = vmatprep.subr.bf16.mxu0 0
        %1845 = vmatpush1.bf16.msra.mxu0 0
        %1846 = vmatprep.subr.bf16.mxu0 0
        %1847 = vmatpush1.bf16.msra.mxu0 0
        %1848 = vmatprep.subr.bf16.mxu0 0
        %1849 = vmatpush1.bf16.msra.mxu0 0
        %1850 = vmatprep.subr.bf16.mxu0 0
        %1851 = vmatpush1.bf16.msra.mxu0 0
        %1852 = vmatprep.subr.bf16.mxu0 0
        %1853 = vmatpush1.bf16.msra.mxu0 0
        %1854 = vmatprep.subr.bf16.mxu0 0
        %1855 = vmatpush1.bf16.msra.mxu0 0
        %1856 = vmatprep.subr.bf16.mxu0 0
        %1857 = vmatpush1.bf16.msra.mxu0 0
        %1858 = vmatprep.subr.bf16.mxu0 0
        %1859 = vmatpush1.bf16.msra.mxu0 0
        %1860 = vmatprep.mubr.bf16.mxu0 0
        %1861 = vmatmul.mubr.bf16.gmra.mrb[0].mxu0 %v1744
        %v1862 = vpop.f32.mrb[0].mxu0
        %v1863 = vadd.f32 0.0, %v1862
        %v1864 = vpop.f32.mrb[0].mxu0
        %v1865 = vadd.f32 0.0, %v1864
        %v1866 = vpop.f32.mrb[0].mxu0
        %v1867 = vpop.f32.mrb[0].mxu0
        %1868 = vdwg.mxu0
        %1869 = vmatprep.subr.bf16.mxu0 0
        %1870 = vmatpush1.bf16.msra.mxu0 %v1735
        %1871 = vmatprep.subr.bf16.mxu0 0
        %1872 = vmatpush1.bf16.msra.mxu0 0
        %1873 = vmatprep.subr.bf16.mxu0 0
        %1874 = vmatpush1.bf16.msra.mxu0 0
        %1875 = vmatprep.subr.bf16.mxu0 0
        %1876 = vmatpush1.bf16.msra.mxu0 0
        %1877 = vmatprep.subr.bf16.mxu0 0
        %1878 = vmatpush1.bf16.msra.mxu0 0
        %1879 = vmatprep.subr.bf16.mxu0 0
        %1880 = vmatpush1.bf16.msra.mxu0 0
        %1881 = vmatprep.subr.bf16.mxu0 0
        %1882 = vmatpush1.bf16.msra.mxu0 0
        %1883 = vmatprep.subr.bf16.mxu0 0
        %1884 = vmatpush1.bf16.msra.mxu0 0
        %1885 = vmatprep.subr.bf16.mxu0 0
        %1886 = vmatpush1.bf16.msra.mxu0 0
        %1887 = vmatprep.subr.bf16.mxu0 0
        %1888 = vmatpush1.bf16.msra.mxu0 0
        %1889 = vmatprep.subr.bf16.mxu0 0
        %1890 = vmatpush1.bf16.msra.mxu0 0
        %1891 = vmatprep.subr.bf16.mxu0 0
        %1892 = vmatpush1.bf16.msra.mxu0 0
        %1893 = vmatprep.subr.bf16.mxu0 0
        %1894 = vmatpush1.bf16.msra.mxu0 0
        %1895 = vmatprep.subr.bf16.mxu0 0
        %1896 = vmatpush1.bf16.msra.mxu0 0
        %1897 = vmatprep.subr.bf16.mxu0 0
        %1898 = vmatpush1.bf16.msra.mxu0 0
        %1899 = vmatprep.subr.bf16.mxu0 0
        %1900 = vmatpush1.bf16.msra.mxu0 0
        %1901 = vmatprep.mubr.bf16.mxu0 0
        %1902 = vmatmul.mubr.bf16.gmra.mrb[0].mxu0 %v1744
        %v1903 = vpop.f32.mrb[0].mxu0
        %v1904 = vadd.f32 0.0, %v1903
        %v1905 = vpop.f32.mrb[0].mxu0
        %v1906 = vpop.f32.mrb[0].mxu0
        %v1907 = vpop.f32.mrb[0].mxu0
        %1908 = vdwg.mxu0
        %v1909 = vadd.f32 %v1703, %v1781
        %v1910 = vadd.f32 %v1704, %v1783
        %v1911 = vadd.f32 %v1705, %v1822
        %v1912 = vadd.f32 %v1706, %v1824
        %v1913 = vadd.f32 %v1707, %v1863
        %v1914 = vadd.f32 %v1708, %v1865
        %v1915 = vadd.f32 %v1709, %v1904
        %s1916 = scalar_lea.vmem [#allocation7], 32
        %v1917 = vld [vmem:[%s1916] sm:$0xf]
        %1918 = vrot.lane.b32.xlu0 %v272, 106
        %v1919 = vpop.permute.xlu0 %1918
        %1920 = vrot.lane.b32.xlu0 %v273, 106
        %v1921 = vpop.permute.xlu0 %1920
        %1922 = vrot.lane.b32.xlu0 %v274, 106
        %v1923 = vpop.permute.xlu0 %1922
        %1924 = vrot.lane.b32.xlu0 %v275, 106
        %v1925 = vpop.permute.xlu0 %1924
        %1926 = vrot.lane.b32.xlu0 %v276, 106
        %v1927 = vpop.permute.xlu0 %1926
        %1928 = vrot.lane.b32.xlu0 %v277, 106
        %v1929 = vpop.permute.xlu0 %1928
        %1930 = vrot.lane.b32.xlu0 %v278, 106
        %v1931 = vpop.permute.xlu0 %1930
        %1932 = vrot.lane.b32.xlu0 %v279, 106
        %v1933 = vpop.permute.xlu0 %1932
        %vm1934 = vcmask 867328
        %v1935 = vsel %vm1934, %v1919, %v1921
        %v1936 = vsel %vm1934, %v1921, %v1923
        %v1937 = vsel %vm1934, %v1923, %v1925
        %v1938 = vsel %vm1934, %v1925, %v1927
        %v1939 = vsel %vm1934, %v1927, %v1929
        %v1940 = vsel %vm1934, %v1929, %v1931
        %v1941 = vsel %vm1934, %v1931, %v1933
        %v1950 = vsel %vm311, %v1917, 0
        %1952 = vmatprep.subr.bf16.mxu0 %v1936
        %1953 = vmatpush1.bf16.msra.mxu0 %v1935
        %1954 = vmatprep.subr.bf16.mxu0 0
        %1955 = vmatpush1.bf16.msra.mxu0 0
        %1956 = vmatprep.subr.bf16.mxu0 0
        %1957 = vmatpush1.bf16.msra.mxu0 0
        %1958 = vmatprep.subr.bf16.mxu0 0
        %1959 = vmatpush1.bf16.msra.mxu0 0
        %1960 = vmatprep.subr.bf16.mxu0 0
        %1961 = vmatpush1.bf16.msra.mxu0 0
        %1962 = vmatprep.subr.bf16.mxu0 0
        %1963 = vmatpush1.bf16.msra.mxu0 0
        %1964 = vmatprep.subr.bf16.mxu0 0
        %1965 = vmatpush1.bf16.msra.mxu0 0
        %1966 = vmatprep.subr.bf16.mxu0 0
        %1967 = vmatpush1.bf16.msra.mxu0 0
        %1968 = vmatprep.subr.bf16.mxu0 0
        %1969 = vmatpush1.bf16.msra.mxu0 0
        %1970 = vmatprep.subr.bf16.mxu0 0
        %1971 = vmatpush1.bf16.msra.mxu0 0
        %1972 = vmatprep.subr.bf16.mxu0 0
        %1973 = vmatpush1.bf16.msra.mxu0 0
        %1974 = vmatprep.subr.bf16.mxu0 0
        %1975 = vmatpush1.bf16.msra.mxu0 0
        %1976 = vmatprep.subr.bf16.mxu0 0
        %1977 = vmatpush1.bf16.msra.mxu0 0
        %1978 = vmatprep.subr.bf16.mxu0 0
        %1979 = vmatpush1.bf16.msra.mxu0 0
        %1980 = vmatprep.subr.bf16.mxu0 0
        %1981 = vmatpush1.bf16.msra.mxu0 0
        %1982 = vmatprep.subr.bf16.mxu0 0
        %1983 = vmatpush1.bf16.msra.mxu0 0
        %1984 = vmatprep.mubr.bf16.mxu0 0
        %1985 = vmatmul.mubr.bf16.gmra.mrb[0].mxu0 %v1950
        %v1986 = vpop.f32.mrb[0].mxu0
        %v1987 = vadd.f32 0.0, %v1986
        %v1988 = vpop.f32.mrb[0].mxu0
        %v1989 = vadd.f32 0.0, %v1988
        %v1990 = vpop.f32.mrb[0].mxu0
        %v1991 = vpop.f32.mrb[0].mxu0
        %1992 = vdwg.mxu0
        %1993 = vmatprep.subr.bf16.mxu0 %v1938
        %1994 = vmatpush1.bf16.msra.mxu0 %v1937
        %1995 = vmatprep.subr.bf16.mxu0 0
        %1996 = vmatpush1.bf16.msra.mxu0 0
        %1997 = vmatprep.subr.bf16.mxu0 0
        %1998 = vmatpush1.bf16.msra.mxu0 0
        %1999 = vmatprep.subr.bf16.mxu0 0
        %2000 = vmatpush1.bf16.msra.mxu0 0
        %2001 = vmatprep.subr.bf16.mxu0 0
        %2002 = vmatpush1.bf16.msra.mxu0 0
        %2003 = vmatprep.subr.bf16.mxu0 0
        %2004 = vmatpush1.bf16.msra.mxu0 0
        %2005 = vmatprep.subr.bf16.mxu0 0
        %2006 = vmatpush1.bf16.msra.mxu0 0
        %2007 = vmatprep.subr.bf16.mxu0 0
        %2008 = vmatpush1.bf16.msra.mxu0 0
        %2009 = vmatprep.subr.bf16.mxu0 0
        %2010 = vmatpush1.bf16.msra.mxu0 0
        %2011 = vmatprep.subr.bf16.mxu0 0
        %2012 = vmatpush1.bf16.msra.mxu0 0
        %2013 = vmatprep.subr.bf16.mxu0 0
        %2014 = vmatpush1.bf16.msra.mxu0 0
        %2015 = vmatprep.subr.bf16.mxu0 0
        %2016 = vmatpush1.bf16.msra.mxu0 0
        %2017 = vmatprep.subr.bf16.mxu0 0
        %2018 = vmatpush1.bf16.msra.mxu0 0
        %2019 = vmatprep.subr.bf16.mxu0 0
        %2020 = vmatpush1.bf16.msra.mxu0 0
        %2021 = vmatprep.subr.bf16.mxu0 0
        %2022 = vmatpush1.bf16.msra.mxu0 0
        %2023 = vmatprep.subr.bf16.mxu0 0
        %2024 = vmatpush1.bf16.msra.mxu0 0
        %2025 = vmatprep.mubr.bf16.mxu0 0
        %2026 = vmatmul.mubr.bf16.gmra.mrb[0].mxu0 %v1950
        %v2027 = vpop.f32.mrb[0].mxu0
        %v2028 = vadd.f32 0.0, %v2027
        %v2029 = vpop.f32.mrb[0].mxu0
        %v2030 = vadd.f32 0.0, %v2029
        %v2031 = vpop.f32.mrb[0].mxu0
        %v2032 = vpop.f32.mrb[0].mxu0
        %2033 = vdwg.mxu0
        %2034 = vmatprep.subr.bf16.mxu0 %v1940
        %2035 = vmatpush1.bf16.msra.mxu0 %v1939
        %2036 = vmatprep.subr.bf16.mxu0 0
        %2037 = vmatpush1.bf16.msra.mxu0 0
        %2038 = vmatprep.subr.bf16.mxu0 0
        %2039 = vmatpush1.bf16.msra.mxu0 0
        %2040 = vmatprep.subr.bf16.mxu0 0
        %2041 = vmatpush1.bf16.msra.mxu0 0
        %2042 = vmatprep.subr.bf16.mxu0 0
        %2043 = vmatpush1.bf16.msra.mxu0 0
        %2044 = vmatprep.subr.bf16.mxu0 0
        %2045 = vmatpush1.bf16.msra.mxu0 0
        %2046 = vmatprep.subr.bf16.mxu0 0
        %2047 = vmatpush1.bf16.msra.mxu0 0
        %2048 = vmatprep.subr.bf16.mxu0 0
        %2049 = vmatpush1.bf16.msra.mxu0 0
        %2050 = vmatprep.subr.bf16.mxu0 0
        %2051 = vmatpush1.bf16.msra.mxu0 0
        %2052 = vmatprep.subr.bf16.mxu0 0
        %2053 = vmatpush1.bf16.msra.mxu0 0
        %2054 = vmatprep.subr.bf16.mxu0 0
        %2055 = vmatpush1.bf16.msra.mxu0 0
        %2056 = vmatprep.subr.bf16.mxu0 0
        %2057 = vmatpush1.bf16.msra.mxu0 0
        %2058 = vmatprep.subr.bf16.mxu0 0
        %2059 = vmatpush1.bf16.msra.mxu0 0
        %2060 = vmatprep.subr.bf16.mxu0 0
        %2061 = vmatpush1.bf16.msra.mxu0 0
        %2062 = vmatprep.subr.bf16.mxu0 0
        %2063 = vmatpush1.bf16.msra.mxu0 0
        %2064 = vmatprep.subr.bf16.mxu0 0
        %2065 = vmatpush1.bf16.msra.mxu0 0
        %2066 = vmatprep.mubr.bf16.mxu0 0
        %2067 = vmatmul.mubr.bf16.gmra.mrb[0].mxu0 %v1950
        %v2068 = vpop.f32.mrb[0].mxu0
        %v2069 = vadd.f32 0.0, %v2068
        %v2070 = vpop.f32.mrb[0].mxu0
        %v2071 = vadd.f32 0.0, %v2070
        %v2072 = vpop.f32.mrb[0].mxu0
        %v2073 = vpop.f32.mrb[0].mxu0
        %2074 = vdwg.mxu0
        %2075 = vmatprep.subr.bf16.mxu0 0
        %2076 = vmatpush1.bf16.msra.mxu0 %v1941
        %2077 = vmatprep.subr.bf16.mxu0 0
        %2078 = vmatpush1.bf16.msra.mxu0 0
        %2079 = vmatprep.subr.bf16.mxu0 0
        %2080 = vmatpush1.bf16.msra.mxu0 0
        %2081 = vmatprep.subr.bf16.mxu0 0
        %2082 = vmatpush1.bf16.msra.mxu0 0
        %2083 = vmatprep.subr.bf16.mxu0 0
        %2084 = vmatpush1.bf16.msra.mxu0 0
        %2085 = vmatprep.subr.bf16.mxu0 0
        %2086 = vmatpush1.bf16.msra.mxu0 0
        %2087 = vmatprep.subr.bf16.mxu0 0
        %2088 = vmatpush1.bf16.msra.mxu0 0
        %2089 = vmatprep.subr.bf16.mxu0 0
        %2090 = vmatpush1.bf16.msra.mxu0 0
        %2091 = vmatprep.subr.bf16.mxu0 0
        %2092 = vmatpush1.bf16.msra.mxu0 0
        %2093 = vmatprep.subr.bf16.mxu0 0
        %2094 = vmatpush1.bf16.msra.mxu0 0
        %2095 = vmatprep.subr.bf16.mxu0 0
        %2096 = vmatpush1.bf16.msra.mxu0 0
        %2097 = vmatprep.subr.bf16.mxu0 0
        %2098 = vmatpush1.bf16.msra.mxu0 0
        %2099 = vmatprep.subr.bf16.mxu0 0
        %2100 = vmatpush1.bf16.msra.mxu0 0
        %2101 = vmatprep.subr.bf16.mxu0 0
        %2102 = vmatpush1.bf16.msra.mxu0 0
        %2103 = vmatprep.subr.bf16.mxu0 0
        %2104 = vmatpush1.bf16.msra.mxu0 0
        %2105 = vmatprep.subr.bf16.mxu0 0
        %2106 = vmatpush1.bf16.msra.mxu0 0
        %2107 = vmatprep.mubr.bf16.mxu0 0
        %2108 = vmatmul.mubr.bf16.gmra.mrb[0].mxu0 %v1950
        %v2109 = vpop.f32.mrb[0].mxu0
        %v2110 = vadd.f32 0.0, %v2109
        %v2111 = vpop.f32.mrb[0].mxu0
        %v2112 = vpop.f32.mrb[0].mxu0
        %v2113 = vpop.f32.mrb[0].mxu0
        %2114 = vdwg.mxu0
        %v2115 = vadd.f32 %v1909, %v1987
        %v2116 = vadd.f32 %v1910, %v1989
        %v2117 = vadd.f32 %v1911, %v2028
        %v2118 = vadd.f32 %v1912, %v2030
        %v2119 = vadd.f32 %v1913, %v2069
        %v2120 = vadd.f32 %v1914, %v2071
        %v2121 = vadd.f32 %v1915, %v2110
        %v2122 = vld [vmem:[%s2] sm:$0xff]
        %v2124 = vlaneseq
        %v2125 = vshrl.u32 %v2124, 7
        %v2126 = vsub.s32 0, %v2125
        %v2127 = vrot.slane %v2122, %v2126
        %v2128 = vlaneseq
        %v2129 = vshrl.u32 %v2128, 7
        %v2130 = vsub.s32 1, %v2129
        %v2131 = vrot.slane %v2122, %v2130
        %v2132 = vlaneseq
        %v2133 = vshrl.u32 %v2132, 7
        %v2134 = vsub.s32 2, %v2133
        %v2135 = vrot.slane %v2122, %v2134
        %v2136 = vlaneseq
        %v2137 = vshrl.u32 %v2136, 7
        %v2138 = vsub.s32 3, %v2137
        %v2139 = vrot.slane %v2122, %v2138
        %v2140 = vlaneseq
        %v2141 = vshrl.u32 %v2140, 7
        %v2142 = vsub.s32 4, %v2141
        %v2143 = vrot.slane %v2122, %v2142
        %v2144 = vlaneseq
        %v2145 = vshrl.u32 %v2144, 7
        %v2146 = vsub.s32 5, %v2145
        %v2147 = vrot.slane %v2122, %v2146
        %v2148 = vlaneseq
        %v2149 = vshrl.u32 %v2148, 7
        %v2150 = vsub.s32 6, %v2149
        %v2151 = vrot.slane %v2122, %v2150
        %v2159 = vmul.f32 %v2115, %v2127
        %v2160 = vmul.f32 %v2116, %v2131
        %v2161 = vmul.f32 %v2117, %v2135
        %v2162 = vmul.f32 %v2118, %v2139
        %v2163 = vmul.f32 %v2119, %v2143
        %v2164 = vmul.f32 %v2120, %v2147
        %v2165 = vmul.f32 %v2121, %v2151
        %v2166 = vld [vmem:[#allocation2] sm:$0xff]
        %v2167 = vadd.f32 %v2159, %v2160
        %v2168 = vadd.f32 %v2167, %v2161
        %v2169 = vadd.f32 %v2168, %v2162
        %v2170 = vadd.f32 %v2169, %v2163
        %v2171 = vadd.f32 %v2170, %v2164
        %v2172 = vadd.f32 %v2171, %v2165
        %2173 = vadd.xlane.f32.xlu0 %v2172
        %v2174 = vpop.xlane.xlu0 %2173
        %v2175 = vadd.f32 %v2166, %v2174
        %vm2176 = vcmask 7168
        %2177 = vst.msk [vmem:[#allocation2] sm:$0xff] %vm2176, %v2175
        %v2178 = vld [vmem:[#allocation3] sm:$0xff]
        %v2179 = vmul.f32 %v2159, %v2159
        %v2180 = vmul.f32 %v2160, %v2160
        %v2181 = vmul.f32 %v2161, %v2161
        %v2182 = vmul.f32 %v2162, %v2162
        %v2183 = vmul.f32 %v2163, %v2163
        %v2184 = vmul.f32 %v2164, %v2164
        %v2185 = vmul.f32 %v2165, %v2165
        %v2186 = vadd.f32 %v2179, %v2180
        %v2187 = vadd.f32 %v2186, %v2181
        %v2188 = vadd.f32 %v2187, %v2182
        %v2189 = vadd.f32 %v2188, %v2183
        %v2190 = vadd.f32 %v2189, %v2184
        %v2191 = vadd.f32 %v2190, %v2185
        %2192 = vadd.xlane.f32.xlu0 %v2191
        %v2193 = vpop.xlane.xlu0 %2192
        %v2194 = vadd.f32 %v2178, %v2193
        %2195 = vst.msk [vmem:[#allocation3] sm:$0xff] %vm2176, %v2194
        %s2196 = smul.u32 %s26, 896
        %s2197 = sshra.s32 %s2196, 7
        %s2198 = sand.u32 %s2196, 127
        %s2199 = smul.addr %s2197, 8
        %s2200 = scalar_lea.vmem %s219, %s2199 [#allocation9]
        %2201 = vst [vmem:[%s2200] sm:$0xff] %v2159
        %2202 = vst [vmem:[%s2200 + $0x8] sm:$0xff] %v2160
        %2203 = vst [vmem:[%s2200 + $0x10] sm:$0xff] %v2161
        %2204 = vst [vmem:[%s2200 + $0x18] sm:$0xff] %v2162
        %2205 = vst [vmem:[%s2200 + $0x20] sm:$0xff] %v2163
        %2206 = vst [vmem:[%s2200 + $0x28] sm:$0xff] %v2164
        %2207 = vst [vmem:[%s2200 + $0x30] sm:$0xff] %v2165
        // Predicated region
        $region45: #{tpu_custom_call.1} parent=31 // pred_check
          %p2208 = pneg %p222
        $region46: #{tpu_custom_call.1} parent=31 // pred_check_branch
          %2210 = sbr.rel (%p2208) target = $region48
        $region47: #{tpu_custom_call.1} parent=31 // pred_region
          %v2211 = vld [vmem:[#allocation2] sm:$0xff]
          %v2212 = vmul.f32 %v2211, 0.001953125
          %v2213 = vld [vmem:[#allocation3] sm:$0xff]
          %v2214 = vmul.f32 %v2213, 0.001953125
          %v2215 = vmul.f32 %v2212, %v2212
          %v2216 = vsub.f32 %v2214, %v2215
          %v2217 = vmax.f32 %v2216, 0.0
          %v2218 = vadd.f32 %v2217, 1e-05
          %v2219 = vrsqrt.pop %v2218
          %v2220 = vld [vmem:[%s219] sm:$0xff]
          %v2221 = vld [vmem:[%s219 + $0x8] sm:$0xff]
          %v2222 = vld [vmem:[%s219 + $0x10] sm:$0xff]
          %v2223 = vld [vmem:[%s219 + $0x18] sm:$0xff]
          %v2224 = vld [vmem:[%s219 + $0x20] sm:$0xff]
          %v2225 = vld [vmem:[%s219 + $0x28] sm:$0xff]
          %v2226 = vld [vmem:[%s219 + $0x30] sm:$0xff]
          %2228 = vset.pattern.permute.xlu0 0
          %2229 = vperm.xlu0 %2228, %v2212
          %v2230 = vpop.permute.xlu0 %2229
          %v2232 = vsub.f32 %v2220, %v2230
          %v2233 = vsub.f32 %v2221, %v2230
          %v2234 = vsub.f32 %v2222, %v2230
          %v2235 = vsub.f32 %v2223, %v2230
          %v2236 = vsub.f32 %v2224, %v2230
          %v2237 = vsub.f32 %v2225, %v2230
          %v2238 = vsub.f32 %v2226, %v2230
          %2240 = vset.pattern.permute.xlu0 0
          %2241 = vperm.xlu0 %2240, %v2219
          %v2242 = vpop.permute.xlu0 %2241
          %v2244 = vmul.f32 %v2232, %v2242
          %v2245 = vmul.f32 %v2233, %v2242
          %v2246 = vmul.f32 %v2234, %v2242
          %v2247 = vmul.f32 %v2235, %v2242
          %v2248 = vmul.f32 %v2236, %v2242
          %v2249 = vmul.f32 %v2237, %v2242
          %v2250 = vmul.f32 %v2238, %v2242
          %vm2251 = vcmp.gt.f32.partialorder %v2244, 0.0
          %vm2252 = vcmp.gt.f32.partialorder %v2245, 0.0
          %vm2253 = vcmp.gt.f32.partialorder %v2246, 0.0
          %vm2254 = vcmp.gt.f32.partialorder %v2247, 0.0
          %vm2255 = vcmp.gt.f32.partialorder %v2248, 0.0
          %vm2256 = vcmp.gt.f32.partialorder %v2249, 0.0
          %vm2257 = vcmp.gt.f32.partialorder %v2250, 0.0
          %v2258 = vmul.f32 %v2244, 0.1
          %v2259 = vmul.f32 %v2245, 0.1
          %v2260 = vmul.f32 %v2246, 0.1
          %v2261 = vmul.f32 %v2247, 0.1
          %v2262 = vmul.f32 %v2248, 0.1
          %v2263 = vmul.f32 %v2249, 0.1
          %v2264 = vmul.f32 %v2250, 0.1
          %v2265 = vsel %vm2251, %v2244, %v2258
          %v2266 = vsel %vm2252, %v2245, %v2259
          %v2267 = vsel %vm2253, %v2246, %v2260
          %v2268 = vsel %vm2254, %v2247, %v2261
          %v2269 = vsel %vm2255, %v2248, %v2262
          %v2270 = vsel %vm2256, %v2249, %v2263
          %v2271 = vsel %vm2257, %v2250, %v2264
          %2272 = vst [vmem:[%s219] sm:$0xff] %v2265
          %2273 = vst [vmem:[%s219 + $0x8] sm:$0xff] %v2266
          %2274 = vst [vmem:[%s219 + $0x10] sm:$0xff] %v2267
          %2275 = vst [vmem:[%s219 + $0x18] sm:$0xff] %v2268
          %2276 = vst [vmem:[%s219 + $0x20] sm:$0xff] %v2269
          %2277 = vst [vmem:[%s219 + $0x28] sm:$0xff] %v2270
          %2278 = vst [vmem:[%s219 + $0x30] sm:$0xff] %v2271
        $region48: #{tpu_custom_call.1} parent=31 // pred_fallthru
          _
        %s2279 = sand.u32 %s111, 1
        %s2280 = scalar_lea.sflag [#allocation6], %s2279
        %s2281 = sand.u32 %s111, 1
        %s2282 = smul.addr %s2281, 56
        %s2283 = scalar_lea.vmem [#allocation9], %s2282
        // Predicated region
        $region49: #{tpu_custom_call.1} parent=31 // pred_check
          %p2284 = pneg %p121
        $region50: #{tpu_custom_call.1} parent=31 // pred_check_branch
          %2286 = sbr.rel (%p2284) target = $region52
        $region51: #{tpu_custom_call.1} parent=31 // pred_region
          %s2288 = ssub.s32 896, 896
          %2289 = vsyncadd %s2280, %s2288
          %s2290 = smul.addr %s25, 7
          %s2291 = smul.addr %s2290, 128
          %s2292 = scalar_lea.hbm %s3, %s2291
          %s2294 = sshll.u32 %s2283, 4
          %s2295 = int_to_ptr.vmem [resolvable:$true] %s2294
          %2297 = dma.vmem_to_hbm [thread:$0]  %s2295, 896, %s2292, %s2280
        $region52: #{tpu_custom_call.1} parent=31 // pred_fallthru
          _
      $region32: #{tpu_custom_call.1} parent=5 // pred_fallthru
        _
      %p2298 = scmp.le.s32.totalorder 2, %s16
      // Predicated region
      $region53: #{tpu_custom_call.1} parent=5 // pred_check
        %p2299 = pneg %p2298
      $region54: #{tpu_custom_call.1} parent=5 // pred_check_branch
        %2301 = sbr.rel (%p2299) target = $region56
      $region55: #{tpu_custom_call.1} parent=5 // pred_region
        %s2302 = ssub.s32 %s16, 2
        // Predicated region
        $region57: #{tpu_custom_call.1} parent=55 // pred_check
          %p2303 = pneg %p127
        $region58: #{tpu_custom_call.1} parent=55 // pred_check_branch
          %2305 = sbr.rel (%p2303) target = $region60
        $region59: #{tpu_custom_call.1} parent=55 // pred_region
          %s2306 = sand.u32 %s112, 1
          %s2307 = scalar_lea.sflag [#allocation6], %s2306
          %s2308 = sand.u32 %s112, 1
          %s2309 = smul.addr %s2308, 56
          %s2310 = scalar_lea.vmem [#allocation9], %s2309
          %2311 = dma.done %s2307, 896
        $region60: #{tpu_custom_call.1} parent=55 // pred_fallthru
          _
      $region56: #{tpu_custom_call.1} parent=5 // pred_fallthru
        _
    $region6: #{tpu_custom_call.1} parent=1 // loop_footer
      %s20 = sadd.s32 1, %s16
    $region7: #{tpu_custom_call.1} parent=1 // loop_footer_branch
      %15 = sbr.rel target = $region3
    $region8: #{tpu_custom_call.1} parent=1 // loop_exit
      _
    %2312 = vsyncpa [#allocation5], 1
    %s2313 = scalar_lea.sflag [#allocation5], 1
    %2314 = vsyncpa %s2313, 1
    %2315 = vsyncpa [#allocation8], 1
    %2316 = vsyncpa [#allocation6], 1
    %s2317 = scalar_lea.sflag [#allocation6], 1
    %2318 = vsyncpa %s2317, 1

</llo_original>
